<compile_context>
chip_gen: v7x
topology: tpu7x:2x2x1
jax: 0.10.0
libtpu: 0.0.40
codegen_flags: <defaults>
</compile_context>

<pallas_src>
import jax
import jax.numpy as jnp
from jax.experimental import pallas as pl
from jax.experimental.pallas import tpu as pltpu


# ----------------------------------------------------------------------------
# Fused Pallas kernel
# ----------------------------------------------------------------------------
def _leaky_relu(x, slope=0.2):
    return jnp.where(x >= 0, x, slope * x)


def _grn_fused_kernel(x_ref, a_ref,
                      wx1_ref, wblk1_ref, b1_ref,
                      wxl_ref, wblkl_ref, bl_ref,
                      wx6_ref, b6_ref,
                      out_ref):
    """Whole GRN forward (eval mode) in a single program.

    x_ref    : (N, Fin)       bf16 node features
    a_ref    : (N, N)         bf16 gcn_norm'd dense adjacency (dst, src)
    wx1_ref  : (Fin, 8H)      bf16  [init_0|init_1|root_00|root_01|root_10|root_11|df_0|df_1]
                              where df_k = 0.5*(init_0+init_1) @ dense_w[1][k]  (folded)
    wblk1_ref: (2H, 2H)       bf16  block-diag(weight[0][0], weight[0][1])
    b1_ref   : (H,)  SMEM f32 (reference indexes bias[t] -> scalar)
    wxl_ref / wblkl_ref / bl_ref : same, stacked over layers 2..5
    wx6_ref  : (H, 2C)        bf16  [init_0 | root_00] of the final K=1,T=1 layer
    b6_ref   : (C,)  SMEM f32
    out_ref  : (N, C) f32     log_softmax output
    """
    A = a_ref[...]                       # (N, N) bf16, resident for all layers
    h = x_ref[...]                       # (N, Fin) bf16

    def gen22(h, wx, wblk, b_t0, b_t1):
        H = wblk.shape[0] // 2
        # One batched x-side matmul:
        #   [x0_0|x0_1 | r0_0|r0_1 | r1_0|r1_1 | dense_0|dense_1]
        xw = jnp.dot(h, wx, preferred_element_type=jnp.float32)          # (N, 8H)
        x0_cat = xw[:, 0 * H:2 * H]
        r0_cat = xw[:, 2 * H:4 * H]
        r1_cat = xw[:, 4 * H:6 * H]
        dr_cat = xw[:, 6 * H:8 * H]      # folded dense_root (both stacks)
        # ---- t = 0 : both stacks propagated in one A-dot ----
        p0_cat = jnp.dot(A, x0_cat.astype(jnp.bfloat16),
                         preferred_element_type=jnp.float32)             # (N, 2H)
        o0_cat = _leaky_relu(p0_cat + r0_cat + b_t0)
        # ---- t = 1 ----
        # block-diag weight => [o0_0 @ w_0 | o0_1 @ w_1] in one dot
        m_cat = jnp.dot(o0_cat.astype(jnp.bfloat16), wblk,
                        preferred_element_type=jnp.float32)              # (N, 2H)
        p1_cat = jnp.dot(A, m_cat.astype(jnp.bfloat16),
                         preferred_element_type=jnp.float32)             # (N, 2H)
        o1_cat = _leaky_relu(p1_cat + r1_cat + 0.6 * dr_cat + b_t1)
        acc = o1_cat[:, :H] + o1_cat[:, H:]                              # sum over stacks
        return jnp.maximum(acc, 0.0)                                     # GRN-level F.relu

    # ---- layer 1 (Fin -> H) ----
    h = gen22(h, wx1_ref[...], wblk1_ref[...],
              b1_ref[0], b1_ref[1]).astype(jnp.bfloat16)
    # ---- layers 2..5 (H -> H), fully unrolled (LLO-visible) ----
    for li in range(4):
        h = gen22(h, wxl_ref[li], wblkl_ref[li],
                  bl_ref[li, 0], bl_ref[li, 1]).astype(jnp.bfloat16)
    # ---- layer 6 (K=1, T=1, H -> C) + log_softmax ----
    C = out_ref.shape[-1]
    xw = jnp.dot(h, wx6_ref[...], preferred_element_type=jnp.float32)    # (N, 2C)
    x0 = xw[:, :C]
    r0 = xw[:, C:]
    p = jnp.dot(A, x0.astype(jnp.bfloat16), preferred_element_type=jnp.float32)
    o = _leaky_relu(p + r0 + b6_ref[0])
    m = jnp.max(o, axis=-1, keepdims=True)
    s = o - m
    lse = jnp.log(jnp.sum(jnp.exp(s), axis=-1, keepdims=True))
    out_ref[...] = s - lse


# ----------------------------------------------------------------------------
# Weight packing (done once per forward, outside the kernel, in f32)
# ----------------------------------------------------------------------------
def _block_diag2(w0, w1):
    H = w0.shape[0]
    z = jnp.zeros((H, H), w0.dtype)
    top = jnp.concatenate([w0, z], axis=1)
    bot = jnp.concatenate([z, w1], axis=1)
    return jnp.concatenate([top, bot], axis=0)


def _prep_gen22(p):
    iw = p["init_weight"]            # (2, Fin, H)
    rw = p["root_weight"]            # (2, 2, Fin, H)
    w = p["weight"][0]               # (2, H, H)
    dw = p["dense_weight"][1]        # (2, H, H)   (only t=1 is used)
    # Fold the t=1 dense-root path into the x-side weight (exact in eval mode):
    #   mean_k(x @ iw[k]) @ dw[k] == x @ (0.5*(iw0+iw1) @ dw[k])
    iw_mean = 0.5 * (iw[0] + iw[1])                                   # (Fin, H) f32
    wdf = jnp.concatenate([iw_mean @ dw[0], iw_mean @ dw[1]], axis=-1)  # (Fin, 2H)
    wx = jnp.concatenate(
        [iw[0], iw[1], rw[0, 0], rw[0, 1], rw[1, 0], rw[1, 1], wdf], axis=-1)  # (Fin, 8H)
    wblk = _block_diag2(w[0], w[1])
    return (wx.astype(jnp.bfloat16), wblk.astype(jnp.bfloat16),
            p["bias"].astype(jnp.float32))


# ----------------------------------------------------------------------------
# GRN forward (eval mode: dropout is identity) -- single pallas_call
# ----------------------------------------------------------------------------
def grn_forward(x, edge_index, params):
    N = x.shape[0]
    A = build_norm_adj(edge_index, N).astype(jnp.bfloat16)
    xb = x.astype(jnp.bfloat16)

    wx1, wblk1, b1 = _prep_gen22(params[0])
    packs = [_prep_gen22(p) for p in params[1:5]]
    wxl = jnp.stack([p[0] for p in packs])      # (4, H, 8H)
    wblkl = jnp.stack([p[1] for p in packs])    # (4, 2H, 2H)
    bl = jnp.stack([p[2] for p in packs])       # (4, H)

    p6 = params[5]
    wx6 = jnp.concatenate(
        [p6["init_weight"][0], p6["root_weight"][0, 0]], axis=-1).astype(jnp.bfloat16)
    b6 = p6["bias"].astype(jnp.float32)
    C = p6["init_weight"].shape[-1]

    vm = pl.BlockSpec(memory_space=pltpu.MemorySpace.VMEM)
    sm = pl.BlockSpec(memory_space=pltpu.MemorySpace.SMEM)
    return pl.pallas_call(
        _grn_fused_kernel,
        out_shape=jax.ShapeDtypeStruct((N, C), jnp.float32),
        in_specs=[vm, vm,            # x, A
                  vm, vm, sm,        # layer 1
                  vm, vm, sm,        # layers 2..5 (stacked)
                  vm, sm],           # layer 6
        out_specs=vm,
        compiler_params=pltpu.CompilerParams(vmem_limit_bytes=32 << 20),
    )(xb, A, wx1, wblk1, b1, wxl, wblkl, bl, wx6, b6)


# ----------------------------------------------------------------------------
# Graph glue: gcn_norm (add_self_loops=False) -> dense adjacency
# ----------------------------------------------------------------------------
def build_norm_adj(edge_index, num_nodes):
    row, col = edge_index[0], edge_index[1]       # row=source, col=target
    w = jnp.ones(row.shape[0], jnp.float32)
    deg = jnp.zeros((num_nodes,), jnp.float32).at[col].add(w)
    dinv = jnp.where(deg > 0, 1.0 / jnp.sqrt(deg), 0.0)
    norm = dinv[row] * w * dinv[col]
    # aggregation at target i over sources j:  out[i] = sum_j A[i, j] x[j]
    return jnp.zeros((num_nodes, num_nodes), jnp.float32).at[col, row].add(norm)


# ----------------------------------------------------------------------------
# Parameter init (deterministic, glorot as in torch_geometric)
# ----------------------------------------------------------------------------
def _glorot(key, shape):
    fan_in, fan_out = shape[-2], shape[-1]
    a = (6.0 / (fan_in + fan_out)) ** 0.5
    return jax.random.uniform(key, shape, jnp.float32, -a, a)


def init_gen_params(key, fin, fout, num_stacks, num_layers):
    K, T = num_stacks, num_layers
    ks = jax.random.split(key, 4)
    return {
        "weight":       _glorot(ks[0], (max(1, T - 1), K, fout, fout)),
        "init_weight":  _glorot(ks[1], (K, fin, fout)),
        "root_weight":  _glorot(ks[2], (T, K, fin, fout)),
        "dense_weight": _glorot(ks[3], (T, K, fout, fout)),
        "bias":         jnp.zeros((fout,), jnp.float32),   # zeros(self.bias)
    }


def init_grn_params(key, num_features, hid_size, num_classes):
    ks = jax.random.split(key, 6)
    return [
        init_gen_params(ks[0], num_features, hid_size, 2, 2),
        init_gen_params(ks[1], hid_size, hid_size, 2, 2),
        init_gen_params(ks[2], hid_size, hid_size, 2, 2),
        init_gen_params(ks[3], hid_size, hid_size, 2, 2),
        init_gen_params(ks[4], hid_size, hid_size, 2, 2),
        init_gen_params(ks[5], hid_size, num_classes, 1, 1),
    ]


# ----------------------------------------------------------------------------
# Main
# ----------------------------------------------------------------------------
if __name__ == "__main__":
    N = 16                 # nodes
    NUM_FEATURES = 8
    HID_SIZE = 32
    NUM_CLASSES = 8

    key = jax.random.PRNGKey(0)
    k_x, k_p = jax.random.split(key)

    x = jax.random.normal(k_x, (N, NUM_FEATURES), jnp.float32)

    # deterministic edge set: ring (both directions) + skip-3 edges
    src = jnp.arange(N, dtype=jnp.int32)
    edge_index = jnp.concatenate(
        [
            jnp.stack([src, (src + 1) % N]),
            jnp.stack([(src + 1) % N, src]),
            jnp.stack([src, (src + 3) % N]),
        ],
        axis=1,
    )  # (2, 48)

    params = init_grn_params(k_p, NUM_FEATURES, HID_SIZE, NUM_CLASSES)

    out = jax.jit(grn_forward)(x, edge_index, params)
    out = jax.block_until_ready(out)

    assert out.shape == (N, NUM_CLASSES)
    assert bool(jnp.all(jnp.isfinite(out)))
    # log_softmax rows must normalize (exactness is independent of bf16 matmuls)
    row_sums = jnp.sum(jnp.exp(out), axis=-1)
    assert bool(jnp.all(jnp.abs(row_sums - 1.0) < 1e-3))
    print("KERNEL_OK")
</pallas_src>

<mosaic_0001>
module attributes {stable_mosaic.version = 11 : i64} {
  func.func private @main(%arg0: i32) attributes {dimension_semantics = [#tpu.dimension_semantics<core_parallel>], iteration_bounds = array<i64: 2>, tpu.core_type = #tpu.core_type<sc_scalar_subcore>, window_params = []} {
    return
  }
}

module attributes {stable_mosaic.version = 11 : i64} {
  func.func private @main(%arg0: i32) attributes {dimension_semantics = [#tpu.dimension_semantics<core_parallel>], iteration_bounds = array<i64: 2>, tpu.core_type = #tpu.core_type<sc_scalar_subcore>, window_params = []} {
    return
  }
}

module attributes {stable_mosaic.version = 11 : i64} {
  func.func @_grn_fused_kernel(%arg0: memref<16x8xbf16, #tpu.memory_space<vmem>>, %arg1: memref<16x16xbf16, #tpu.memory_space<vmem>>, %arg2: memref<8x256xbf16, #tpu.memory_space<vmem>>, %arg3: memref<64x64xbf16, #tpu.memory_space<vmem>>, %arg4: memref<32xf32, #tpu.memory_space<smem>>, %arg5: memref<4x32x256xbf16, #tpu.memory_space<vmem>>, %arg6: memref<4x64x64xbf16, #tpu.memory_space<vmem>>, %arg7: memref<4x32xf32, #tpu.memory_space<smem>>, %arg8: memref<32x16xbf16, #tpu.memory_space<vmem>>, %arg9: memref<8xf32, #tpu.memory_space<smem>>, %arg10: memref<16x8xf32, #tpu.memory_space<vmem>>) attributes {dimension_semantics = [], scalar_prefetch = 0 : i64, scratch_operands = 0 : i64, tpu.core_type = #tpu.core_type<tc>} {
    %c0 = arith.constant 0 : index
    %c0_0 = arith.constant 0 : index
    %0 = vector.load %arg1[%c0, %c0_0] : memref<16x16xbf16, #tpu.memory_space<vmem>>, vector<16x16xbf16>
    %c0_1 = arith.constant 0 : index
    %c0_2 = arith.constant 0 : index
    %1 = vector.load %arg0[%c0_1, %c0_2] : memref<16x8xbf16, #tpu.memory_space<vmem>>, vector<16x8xbf16>
    %c0_3 = arith.constant 0 : index
    %c0_4 = arith.constant 0 : index
    %2 = vector.load %arg2[%c0_3, %c0_4] : memref<8x256xbf16, #tpu.memory_space<vmem>>, vector<8x256xbf16>
    %c0_5 = arith.constant 0 : index
    %c0_6 = arith.constant 0 : index
    %3 = vector.load %arg3[%c0_5, %c0_6] : memref<64x64xbf16, #tpu.memory_space<vmem>>, vector<64x64xbf16>
    %c0_7 = arith.constant 0 : index
    %4 = memref.load %arg4[%c0_7] : memref<32xf32, #tpu.memory_space<smem>>
    %c1 = arith.constant 1 : index
    %5 = memref.load %arg4[%c1] : memref<32xf32, #tpu.memory_space<smem>>
    %cst = arith.constant dense<0.000000e+00> : vector<16x256xf32>
    %6 = tpu.matmul %1, %2, %cst {dimension_numbers = #tpu.dot_dimension_numbers<[1], [0], [0], [1], [0, 0, 1, 1], [], []>} : vector<16x8xbf16>, vector<8x256xbf16>, vector<16x256xf32> -> vector<16x256xf32>
    %7 = vector.extract_strided_slice %6 {offsets = [0, 0], sizes = [16, 64], strides = [1, 1]} : vector<16x256xf32> to vector<16x64xf32>
    %8 = vector.extract_strided_slice %6 {offsets = [0, 64], sizes = [16, 64], strides = [1, 1]} : vector<16x256xf32> to vector<16x64xf32>
    %9 = vector.extract_strided_slice %6 {offsets = [0, 128], sizes = [16, 64], strides = [1, 1]} : vector<16x256xf32> to vector<16x64xf32>
    %10 = vector.extract_strided_slice %6 {offsets = [0, 192], sizes = [16, 64], strides = [1, 1]} : vector<16x256xf32> to vector<16x64xf32>
    %11 = arith.truncf %7 : vector<16x64xf32> to vector<16x64xbf16>
    %cst_8 = arith.constant dense<0.000000e+00> : vector<16x64xf32>
    %12 = tpu.matmul %0, %11, %cst_8 {dimension_numbers = #tpu.dot_dimension_numbers<[1], [0], [0], [1], [0, 0, 1, 1], [], []>} : vector<16x16xbf16>, vector<16x64xbf16>, vector<16x64xf32> -> vector<16x64xf32>
    %13 = arith.addf %12, %8 : vector<16x64xf32>
    %14 = vector.broadcast %4 : f32 to vector<16x64xf32>
    %15 = arith.addf %13, %14 : vector<16x64xf32>
    %cst_9 = arith.constant 0.000000e+00 : f32
    %16 = vector.broadcast %cst_9 : f32 to vector<16x64xf32>
    %17 = arith.cmpf oge, %15, %16 : vector<16x64xf32>
    %cst_10 = arith.constant 2.000000e-01 : f32
    %18 = vector.broadcast %cst_10 : f32 to vector<16x64xf32>
    %19 = arith.mulf %18, %15 : vector<16x64xf32>
    %20 = arith.select %17, %15, %19 : vector<16x64xi1>, vector<16x64xf32>
    %21 = arith.truncf %20 : vector<16x64xf32> to vector<16x64xbf16>
    %cst_11 = arith.constant dense<0.000000e+00> : vector<16x64xf32>
    %22 = tpu.matmul %21, %3, %cst_11 {dimension_numbers = #tpu.dot_dimension_numbers<[1], [0], [0], [1], [0, 0, 1, 1], [], []>} : vector<16x64xbf16>, vector<64x64xbf16>, vector<16x64xf32> -> vector<16x64xf32>
    %23 = arith.truncf %22 : vector<16x64xf32> to vector<16x64xbf16>
    %cst_12 = arith.constant dense<0.000000e+00> : vector<16x64xf32>
    %24 = tpu.matmul %0, %23, %cst_12 {dimension_numbers = #tpu.dot_dimension_numbers<[1], [0], [0], [1], [0, 0, 1, 1], [], []>} : vector<16x16xbf16>, vector<16x64xbf16>, vector<16x64xf32> -> vector<16x64xf32>
    %25 = arith.addf %24, %9 : vector<16x64xf32>
    %cst_13 = arith.constant 6.000000e-01 : f32
    %26 = vector.broadcast %cst_13 : f32 to vector<16x64xf32>
    %27 = arith.mulf %26, %10 : vector<16x64xf32>
    %28 = arith.addf %25, %27 : vector<16x64xf32>
    %29 = vector.broadcast %5 : f32 to vector<16x64xf32>
    %30 = arith.addf %28, %29 : vector<16x64xf32>
    %cst_14 = arith.constant 0.000000e+00 : f32
    %31 = vector.broadcast %cst_14 : f32 to vector<16x64xf32>
    %32 = arith.cmpf oge, %30, %31 : vector<16x64xf32>
    %cst_15 = arith.constant 2.000000e-01 : f32
    %33 = vector.broadcast %cst_15 : f32 to vector<16x64xf32>
    %34 = arith.mulf %33, %30 : vector<16x64xf32>
    %35 = arith.select %32, %30, %34 : vector<16x64xi1>, vector<16x64xf32>
    %36 = vector.extract_strided_slice %35 {offsets = [0, 0], sizes = [16, 32], strides = [1, 1]} : vector<16x64xf32> to vector<16x32xf32>
    %37 = vector.extract_strided_slice %35 {offsets = [0, 32], sizes = [16, 32], strides = [1, 1]} : vector<16x64xf32> to vector<16x32xf32>
    %38 = arith.addf %36, %37 : vector<16x32xf32>
    %cst_16 = arith.constant 0.000000e+00 : f32
    %39 = vector.broadcast %cst_16 : f32 to vector<16x32xf32>
    %40 = arith.maximumf %38, %39 : vector<16x32xf32>
    %41 = arith.truncf %40 : vector<16x32xf32> to vector<16x32xbf16>
    %c0_17 = arith.constant 0 : index
    %c0_18 = arith.constant 0 : index
    %c0_19 = arith.constant 0 : index
    %42 = vector.load %arg5[%c0_17, %c0_18, %c0_19] : memref<4x32x256xbf16, #tpu.memory_space<vmem>>, vector<1x32x256xbf16>
    %43 = vector.shape_cast %42 : vector<1x32x256xbf16> to vector<32x256xbf16>
    %c0_20 = arith.constant 0 : index
    %c0_21 = arith.constant 0 : index
    %c0_22 = arith.constant 0 : index
    %44 = vector.load %arg6[%c0_20, %c0_21, %c0_22] : memref<4x64x64xbf16, #tpu.memory_space<vmem>>, vector<1x64x64xbf16>
    %45 = vector.shape_cast %44 : vector<1x64x64xbf16> to vector<64x64xbf16>
    %c0_23 = arith.constant 0 : index
    %c0_24 = arith.constant 0 : index
    %46 = memref.load %arg7[%c0_23, %c0_24] : memref<4x32xf32, #tpu.memory_space<smem>>
    %c0_25 = arith.constant 0 : index
    %c1_26 = arith.constant 1 : index
    %47 = memref.load %arg7[%c0_25, %c1_26] : memref<4x32xf32, #tpu.memory_space<smem>>
    %cst_27 = arith.constant dense<0.000000e+00> : vector<16x256xf32>
    %48 = tpu.matmul %41, %43, %cst_27 {dimension_numbers = #tpu.dot_dimension_numbers<[1], [0], [0], [1], [0, 0, 1, 1], [], []>} : vector<16x32xbf16>, vector<32x256xbf16>, vector<16x256xf32> -> vector<16x256xf32>
    %49 = vector.extract_strided_slice %48 {offsets = [0, 0], sizes = [16, 64], strides = [1, 1]} : vector<16x256xf32> to vector<16x64xf32>
    %50 = vector.extract_strided_slice %48 {offsets = [0, 64], sizes = [16, 64], strides = [1, 1]} : vector<16x256xf32> to vector<16x64xf32>
    %51 = vector.extract_strided_slice %48 {offsets = [0, 128], sizes = [16, 64], strides = [1, 1]} : vector<16x256xf32> to vector<16x64xf32>
    %52 = vector.extract_strided_slice %48 {offsets = [0, 192], sizes = [16, 64], strides = [1, 1]} : vector<16x256xf32> to vector<16x64xf32>
    %53 = arith.truncf %49 : vector<16x64xf32> to vector<16x64xbf16>
    %cst_28 = arith.constant dense<0.000000e+00> : vector<16x64xf32>
    %54 = tpu.matmul %0, %53, %cst_28 {dimension_numbers = #tpu.dot_dimension_numbers<[1], [0], [0], [1], [0, 0, 1, 1], [], []>} : vector<16x16xbf16>, vector<16x64xbf16>, vector<16x64xf32> -> vector<16x64xf32>
    %55 = arith.addf %54, %50 : vector<16x64xf32>
    %56 = vector.broadcast %46 : f32 to vector<16x64xf32>
    %57 = arith.addf %55, %56 : vector<16x64xf32>
    %cst_29 = arith.constant 0.000000e+00 : f32
    %58 = vector.broadcast %cst_29 : f32 to vector<16x64xf32>
    %59 = arith.cmpf oge, %57, %58 : vector<16x64xf32>
    %cst_30 = arith.constant 2.000000e-01 : f32
    %60 = vector.broadcast %cst_30 : f32 to vector<16x64xf32>
    %61 = arith.mulf %60, %57 : vector<16x64xf32>
    %62 = arith.select %59, %57, %61 : vector<16x64xi1>, vector<16x64xf32>
    %63 = arith.truncf %62 : vector<16x64xf32> to vector<16x64xbf16>
    %cst_31 = arith.constant dense<0.000000e+00> : vector<16x64xf32>
    %64 = tpu.matmul %63, %45, %cst_31 {dimension_numbers = #tpu.dot_dimension_numbers<[1], [0], [0], [1], [0, 0, 1, 1], [], []>} : vector<16x64xbf16>, vector<64x64xbf16>, vector<16x64xf32> -> vector<16x64xf32>
    %65 = arith.truncf %64 : vector<16x64xf32> to vector<16x64xbf16>
    %cst_32 = arith.constant dense<0.000000e+00> : vector<16x64xf32>
    %66 = tpu.matmul %0, %65, %cst_32 {dimension_numbers = #tpu.dot_dimension_numbers<[1], [0], [0], [1], [0, 0, 1, 1], [], []>} : vector<16x16xbf16>, vector<16x64xbf16>, vector<16x64xf32> -> vector<16x64xf32>
    %67 = arith.addf %66, %51 : vector<16x64xf32>
    %cst_33 = arith.constant 6.000000e-01 : f32
    %68 = vector.broadcast %cst_33 : f32 to vector<16x64xf32>
    %69 = arith.mulf %68, %52 : vector<16x64xf32>
    %70 = arith.addf %67, %69 : vector<16x64xf32>
    %71 = vector.broadcast %47 : f32 to vector<16x64xf32>
    %72 = arith.addf %70, %71 : vector<16x64xf32>
    %cst_34 = arith.constant 0.000000e+00 : f32
    %73 = vector.broadcast %cst_34 : f32 to vector<16x64xf32>
    %74 = arith.cmpf oge, %72, %73 : vector<16x64xf32>
    %cst_35 = arith.constant 2.000000e-01 : f32
    %75 = vector.broadcast %cst_35 : f32 to vector<16x64xf32>
    %76 = arith.mulf %75, %72 : vector<16x64xf32>
    %77 = arith.select %74, %72, %76 : vector<16x64xi1>, vector<16x64xf32>
    %78 = vector.extract_strided_slice %77 {offsets = [0, 0], sizes = [16, 32], strides = [1, 1]} : vector<16x64xf32> to vector<16x32xf32>
    %79 = vector.extract_strided_slice %77 {offsets = [0, 32], sizes = [16, 32], strides = [1, 1]} : vector<16x64xf32> to vector<16x32xf32>
    %80 = arith.addf %78, %79 : vector<16x32xf32>
    %cst_36 = arith.constant 0.000000e+00 : f32
    %81 = vector.broadcast %cst_36 : f32 to vector<16x32xf32>
    %82 = arith.maximumf %80, %81 : vector<16x32xf32>
    %83 = arith.truncf %82 : vector<16x32xf32> to vector<16x32xbf16>
    %c1_37 = arith.constant 1 : index
    %c0_38 = arith.constant 0 : index
    %c0_39 = arith.constant 0 : index
    %84 = vector.load %arg5[%c1_37, %c0_38, %c0_39] : memref<4x32x256xbf16, #tpu.memory_space<vmem>>, vector<1x32x256xbf16>
    %85 = vector.shape_cast %84 : vector<1x32x256xbf16> to vector<32x256xbf16>
    %c1_40 = arith.constant 1 : index
    %c0_41 = arith.constant 0 : index
    %c0_42 = arith.constant 0 : index
    %86 = vector.load %arg6[%c1_40, %c0_41, %c0_42] : memref<4x64x64xbf16, #tpu.memory_space<vmem>>, vector<1x64x64xbf16>
    %87 = vector.shape_cast %86 : vector<1x64x64xbf16> to vector<64x64xbf16>
    %c1_43 = arith.constant 1 : index
    %c0_44 = arith.constant 0 : index
    %88 = memref.load %arg7[%c1_43, %c0_44] : memref<4x32xf32, #tpu.memory_space<smem>>
    %c1_45 = arith.constant 1 : index
    %c1_46 = arith.constant 1 : index
    %89 = memref.load %arg7[%c1_45, %c1_46] : memref<4x32xf32, #tpu.memory_space<smem>>
    %cst_47 = arith.constant dense<0.000000e+00> : vector<16x256xf32>
    %90 = tpu.matmul %83, %85, %cst_47 {dimension_numbers = #tpu.dot_dimension_numbers<[1], [0], [0], [1], [0, 0, 1, 1], [], []>} : vector<16x32xbf16>, vector<32x256xbf16>, vector<16x256xf32> -> vector<16x256xf32>
    %91 = vector.extract_strided_slice %90 {offsets = [0, 0], sizes = [16, 64], strides = [1, 1]} : vector<16x256xf32> to vector<16x64xf32>
    %92 = vector.extract_strided_slice %90 {offsets = [0, 64], sizes = [16, 64], strides = [1, 1]} : vector<16x256xf32> to vector<16x64xf32>
    %93 = vector.extract_strided_slice %90 {offsets = [0, 128], sizes = [16, 64], strides = [1, 1]} : vector<16x256xf32> to vector<16x64xf32>
    %94 = vector.extract_strided_slice %90 {offsets = [0, 192], sizes = [16, 64], strides = [1, 1]} : vector<16x256xf32> to vector<16x64xf32>
    %95 = arith.truncf %91 : vector<16x64xf32> to vector<16x64xbf16>
    %cst_48 = arith.constant dense<0.000000e+00> : vector<16x64xf32>
    %96 = tpu.matmul %0, %95, %cst_48 {dimension_numbers = #tpu.dot_dimension_numbers<[1], [0], [0], [1], [0, 0, 1, 1], [], []>} : vector<16x16xbf16>, vector<16x64xbf16>, vector<16x64xf32> -> vector<16x64xf32>
    %97 = arith.addf %96, %92 : vector<16x64xf32>
    %98 = vector.broadcast %88 : f32 to vector<16x64xf32>
    %99 = arith.addf %97, %98 : vector<16x64xf32>
    %cst_49 = arith.constant 0.000000e+00 : f32
    %100 = vector.broadcast %cst_49 : f32 to vector<16x64xf32>
    %101 = arith.cmpf oge, %99, %100 : vector<16x64xf32>
    %cst_50 = arith.constant 2.000000e-01 : f32
    %102 = vector.broadcast %cst_50 : f32 to vector<16x64xf32>
    %103 = arith.mulf %102, %99 : vector<16x64xf32>
    %104 = arith.select %101, %99, %103 : vector<16x64xi1>, vector<16x64xf32>
    %105 = arith.truncf %104 : vector<16x64xf32> to vector<16x64xbf16>
    %cst_51 = arith.constant dense<0.000000e+00> : vector<16x64xf32>
    %106 = tpu.matmul %105, %87, %cst_51 {dimension_numbers = #tpu.dot_dimension_numbers<[1], [0], [0], [1], [0, 0, 1, 1], [], []>} : vector<16x64xbf16>, vector<64x64xbf16>, vector<16x64xf32> -> vector<16x64xf32>
    %107 = arith.truncf %106 : vector<16x64xf32> to vector<16x64xbf16>
    %cst_52 = arith.constant dense<0.000000e+00> : vector<16x64xf32>
    %108 = tpu.matmul %0, %107, %cst_52 {dimension_numbers = #tpu.dot_dimension_numbers<[1], [0], [0], [1], [0, 0, 1, 1], [], []>} : vector<16x16xbf16>, vector<16x64xbf16>, vector<16x64xf32> -> vector<16x64xf32>
    %109 = arith.addf %108, %93 : vector<16x64xf32>
    %cst_53 = arith.constant 6.000000e-01 : f32
    %110 = vector.broadcast %cst_53 : f32 to vector<16x64xf32>
    %111 = arith.mulf %110, %94 : vector<16x64xf32>
    %112 = arith.addf %109, %111 : vector<16x64xf32>
    %113 = vector.broadcast %89 : f32 to vector<16x64xf32>
    %114 = arith.addf %112, %113 : vector<16x64xf32>
    %cst_54 = arith.constant 0.000000e+00 : f32
    %115 = vector.broadcast %cst_54 : f32 to vector<16x64xf32>
    %116 = arith.cmpf oge, %114, %115 : vector<16x64xf32>
    %cst_55 = arith.constant 2.000000e-01 : f32
    %117 = vector.broadcast %cst_55 : f32 to vector<16x64xf32>
    %118 = arith.mulf %117, %114 : vector<16x64xf32>
    %119 = arith.select %116, %114, %118 : vector<16x64xi1>, vector<16x64xf32>
    %120 = vector.extract_strided_slice %119 {offsets = [0, 0], sizes = [16, 32], strides = [1, 1]} : vector<16x64xf32> to vector<16x32xf32>
    %121 = vector.extract_strided_slice %119 {offsets = [0, 32], sizes = [16, 32], strides = [1, 1]} : vector<16x64xf32> to vector<16x32xf32>
    %122 = arith.addf %120, %121 : vector<16x32xf32>
    %cst_56 = arith.constant 0.000000e+00 : f32
    %123 = vector.broadcast %cst_56 : f32 to vector<16x32xf32>
    %124 = arith.maximumf %122, %123 : vector<16x32xf32>
    %125 = arith.truncf %124 : vector<16x32xf32> to vector<16x32xbf16>
    %c2 = arith.constant 2 : index
    %c0_57 = arith.constant 0 : index
    %c0_58 = arith.constant 0 : index
    %126 = vector.load %arg5[%c2, %c0_57, %c0_58] : memref<4x32x256xbf16, #tpu.memory_space<vmem>>, vector<1x32x256xbf16>
    %127 = vector.shape_cast %126 : vector<1x32x256xbf16> to vector<32x256xbf16>
    %c2_59 = arith.constant 2 : index
    %c0_60 = arith.constant 0 : index
    %c0_61 = arith.constant 0 : index
    %128 = vector.load %arg6[%c2_59, %c0_60, %c0_61] : memref<4x64x64xbf16, #tpu.memory_space<vmem>>, vector<1x64x64xbf16>
    %129 = vector.shape_cast %128 : vector<1x64x64xbf16> to vector<64x64xbf16>
    %c2_62 = arith.constant 2 : index
    %c0_63 = arith.constant 0 : index
    %130 = memref.load %arg7[%c2_62, %c0_63] : memref<4x32xf32, #tpu.memory_space<smem>>
    %c2_64 = arith.constant 2 : index
    %c1_65 = arith.constant 1 : index
    %131 = memref.load %arg7[%c2_64, %c1_65] : memref<4x32xf32, #tpu.memory_space<smem>>
    %cst_66 = arith.constant dense<0.000000e+00> : vector<16x256xf32>
    %132 = tpu.matmul %125, %127, %cst_66 {dimension_numbers = #tpu.dot_dimension_numbers<[1], [0], [0], [1], [0, 0, 1, 1], [], []>} : vector<16x32xbf16>, vector<32x256xbf16>, vector<16x256xf32> -> vector<16x256xf32>
    %133 = vector.extract_strided_slice %132 {offsets = [0, 0], sizes = [16, 64], strides = [1, 1]} : vector<16x256xf32> to vector<16x64xf32>
    %134 = vector.extract_strided_slice %132 {offsets = [0, 64], sizes = [16, 64], strides = [1, 1]} : vector<16x256xf32> to vector<16x64xf32>
    %135 = vector.extract_strided_slice %132 {offsets = [0, 128], sizes = [16, 64], strides = [1, 1]} : vector<16x256xf32> to vector<16x64xf32>
    %136 = vector.extract_strided_slice %132 {offsets = [0, 192], sizes = [16, 64], strides = [1, 1]} : vector<16x256xf32> to vector<16x64xf32>
    %137 = arith.truncf %133 : vector<16x64xf32> to vector<16x64xbf16>
    %cst_67 = arith.constant dense<0.000000e+00> : vector<16x64xf32>
    %138 = tpu.matmul %0, %137, %cst_67 {dimension_numbers = #tpu.dot_dimension_numbers<[1], [0], [0], [1], [0, 0, 1, 1], [], []>} : vector<16x16xbf16>, vector<16x64xbf16>, vector<16x64xf32> -> vector<16x64xf32>
    %139 = arith.addf %138, %134 : vector<16x64xf32>
    %140 = vector.broadcast %130 : f32 to vector<16x64xf32>
    %141 = arith.addf %139, %140 : vector<16x64xf32>
    %cst_68 = arith.constant 0.000000e+00 : f32
    %142 = vector.broadcast %cst_68 : f32 to vector<16x64xf32>
    %143 = arith.cmpf oge, %141, %142 : vector<16x64xf32>
    %cst_69 = arith.constant 2.000000e-01 : f32
    %144 = vector.broadcast %cst_69 : f32 to vector<16x64xf32>
    %145 = arith.mulf %144, %141 : vector<16x64xf32>
    %146 = arith.select %143, %141, %145 : vector<16x64xi1>, vector<16x64xf32>
    %147 = arith.truncf %146 : vector<16x64xf32> to vector<16x64xbf16>
    %cst_70 = arith.constant dense<0.000000e+00> : vector<16x64xf32>
    %148 = tpu.matmul %147, %129, %cst_70 {dimension_numbers = #tpu.dot_dimension_numbers<[1], [0], [0], [1], [0, 0, 1, 1], [], []>} : vector<16x64xbf16>, vector<64x64xbf16>, vector<16x64xf32> -> vector<16x64xf32>
    %149 = arith.truncf %148 : vector<16x64xf32> to vector<16x64xbf16>
    %cst_71 = arith.constant dense<0.000000e+00> : vector<16x64xf32>
    %150 = tpu.matmul %0, %149, %cst_71 {dimension_numbers = #tpu.dot_dimension_numbers<[1], [0], [0], [1], [0, 0, 1, 1], [], []>} : vector<16x16xbf16>, vector<16x64xbf16>, vector<16x64xf32> -> vector<16x64xf32>
    %151 = arith.addf %150, %135 : vector<16x64xf32>
    %cst_72 = arith.constant 6.000000e-01 : f32
    %152 = vector.broadcast %cst_72 : f32 to vector<16x64xf32>
    %153 = arith.mulf %152, %136 : vector<16x64xf32>
    %154 = arith.addf %151, %153 : vector<16x64xf32>
    %155 = vector.broadcast %131 : f32 to vector<16x64xf32>
    %156 = arith.addf %154, %155 : vector<16x64xf32>
    %cst_73 = arith.constant 0.000000e+00 : f32
    %157 = vector.broadcast %cst_73 : f32 to vector<16x64xf32>
    %158 = arith.cmpf oge, %156, %157 : vector<16x64xf32>
    %cst_74 = arith.constant 2.000000e-01 : f32
    %159 = vector.broadcast %cst_74 : f32 to vector<16x64xf32>
    %160 = arith.mulf %159, %156 : vector<16x64xf32>
    %161 = arith.select %158, %156, %160 : vector<16x64xi1>, vector<16x64xf32>
    %162 = vector.extract_strided_slice %161 {offsets = [0, 0], sizes = [16, 32], strides = [1, 1]} : vector<16x64xf32> to vector<16x32xf32>
    %163 = vector.extract_strided_slice %161 {offsets = [0, 32], sizes = [16, 32], strides = [1, 1]} : vector<16x64xf32> to vector<16x32xf32>
    %164 = arith.addf %162, %163 : vector<16x32xf32>
    %cst_75 = arith.constant 0.000000e+00 : f32
    %165 = vector.broadcast %cst_75 : f32 to vector<16x32xf32>
    %166 = arith.maximumf %164, %165 : vector<16x32xf32>
    %167 = arith.truncf %166 : vector<16x32xf32> to vector<16x32xbf16>
    %c3 = arith.constant 3 : index
    %c0_76 = arith.constant 0 : index
    %c0_77 = arith.constant 0 : index
    %168 = vector.load %arg5[%c3, %c0_76, %c0_77] : memref<4x32x256xbf16, #tpu.memory_space<vmem>>, vector<1x32x256xbf16>
    %169 = vector.shape_cast %168 : vector<1x32x256xbf16> to vector<32x256xbf16>
    %c3_78 = arith.constant 3 : index
    %c0_79 = arith.constant 0 : index
    %c0_80 = arith.constant 0 : index
    %170 = vector.load %arg6[%c3_78, %c0_79, %c0_80] : memref<4x64x64xbf16, #tpu.memory_space<vmem>>, vector<1x64x64xbf16>
    %171 = vector.shape_cast %170 : vector<1x64x64xbf16> to vector<64x64xbf16>
    %c3_81 = arith.constant 3 : index
    %c0_82 = arith.constant 0 : index
    %172 = memref.load %arg7[%c3_81, %c0_82] : memref<4x32xf32, #tpu.memory_space<smem>>
    %c3_83 = arith.constant 3 : index
    %c1_84 = arith.constant 1 : index
    %173 = memref.load %arg7[%c3_83, %c1_84] : memref<4x32xf32, #tpu.memory_space<smem>>
    %cst_85 = arith.constant dense<0.000000e+00> : vector<16x256xf32>
    %174 = tpu.matmul %167, %169, %cst_85 {dimension_numbers = #tpu.dot_dimension_numbers<[1], [0], [0], [1], [0, 0, 1, 1], [], []>} : vector<16x32xbf16>, vector<32x256xbf16>, vector<16x256xf32> -> vector<16x256xf32>
    %175 = vector.extract_strided_slice %174 {offsets = [0, 0], sizes = [16, 64], strides = [1, 1]} : vector<16x256xf32> to vector<16x64xf32>
    %176 = vector.extract_strided_slice %174 {offsets = [0, 64], sizes = [16, 64], strides = [1, 1]} : vector<16x256xf32> to vector<16x64xf32>
    %177 = vector.extract_strided_slice %174 {offsets = [0, 128], sizes = [16, 64], strides = [1, 1]} : vector<16x256xf32> to vector<16x64xf32>
    %178 = vector.extract_strided_slice %174 {offsets = [0, 192], sizes = [16, 64], strides = [1, 1]} : vector<16x256xf32> to vector<16x64xf32>
    %179 = arith.truncf %175 : vector<16x64xf32> to vector<16x64xbf16>
    %cst_86 = arith.constant dense<0.000000e+00> : vector<16x64xf32>
    %180 = tpu.matmul %0, %179, %cst_86 {dimension_numbers = #tpu.dot_dimension_numbers<[1], [0], [0], [1], [0, 0, 1, 1], [], []>} : vector<16x16xbf16>, vector<16x64xbf16>, vector<16x64xf32> -> vector<16x64xf32>
    %181 = arith.addf %180, %176 : vector<16x64xf32>
    %182 = vector.broadcast %172 : f32 to vector<16x64xf32>
    %183 = arith.addf %181, %182 : vector<16x64xf32>
    %cst_87 = arith.constant 0.000000e+00 : f32
    %184 = vector.broadcast %cst_87 : f32 to vector<16x64xf32>
    %185 = arith.cmpf oge, %183, %184 : vector<16x64xf32>
    %cst_88 = arith.constant 2.000000e-01 : f32
    %186 = vector.broadcast %cst_88 : f32 to vector<16x64xf32>
    %187 = arith.mulf %186, %183 : vector<16x64xf32>
    %188 = arith.select %185, %183, %187 : vector<16x64xi1>, vector<16x64xf32>
    %189 = arith.truncf %188 : vector<16x64xf32> to vector<16x64xbf16>
    %cst_89 = arith.constant dense<0.000000e+00> : vector<16x64xf32>
    %190 = tpu.matmul %189, %171, %cst_89 {dimension_numbers = #tpu.dot_dimension_numbers<[1], [0], [0], [1], [0, 0, 1, 1], [], []>} : vector<16x64xbf16>, vector<64x64xbf16>, vector<16x64xf32> -> vector<16x64xf32>
    %191 = arith.truncf %190 : vector<16x64xf32> to vector<16x64xbf16>
    %cst_90 = arith.constant dense<0.000000e+00> : vector<16x64xf32>
    %192 = tpu.matmul %0, %191, %cst_90 {dimension_numbers = #tpu.dot_dimension_numbers<[1], [0], [0], [1], [0, 0, 1, 1], [], []>} : vector<16x16xbf16>, vector<16x64xbf16>, vector<16x64xf32> -> vector<16x64xf32>
    %193 = arith.addf %192, %177 : vector<16x64xf32>
    %cst_91 = arith.constant 6.000000e-01 : f32
    %194 = vector.broadcast %cst_91 : f32 to vector<16x64xf32>
    %195 = arith.mulf %194, %178 : vector<16x64xf32>
    %196 = arith.addf %193, %195 : vector<16x64xf32>
    %197 = vector.broadcast %173 : f32 to vector<16x64xf32>
    %198 = arith.addf %196, %197 : vector<16x64xf32>
    %cst_92 = arith.constant 0.000000e+00 : f32
    %199 = vector.broadcast %cst_92 : f32 to vector<16x64xf32>
    %200 = arith.cmpf oge, %198, %199 : vector<16x64xf32>
    %cst_93 = arith.constant 2.000000e-01 : f32
    %201 = vector.broadcast %cst_93 : f32 to vector<16x64xf32>
    %202 = arith.mulf %201, %198 : vector<16x64xf32>
    %203 = arith.select %200, %198, %202 : vector<16x64xi1>, vector<16x64xf32>
    %204 = vector.extract_strided_slice %203 {offsets = [0, 0], sizes = [16, 32], strides = [1, 1]} : vector<16x64xf32> to vector<16x32xf32>
    %205 = vector.extract_strided_slice %203 {offsets = [0, 32], sizes = [16, 32], strides = [1, 1]} : vector<16x64xf32> to vector<16x32xf32>
    %206 = arith.addf %204, %205 : vector<16x32xf32>
    %cst_94 = arith.constant 0.000000e+00 : f32
    %207 = vector.broadcast %cst_94 : f32 to vector<16x32xf32>
    %208 = arith.maximumf %206, %207 : vector<16x32xf32>
    %209 = arith.truncf %208 : vector<16x32xf32> to vector<16x32xbf16>
    %c0_95 = arith.constant 0 : index
    %c0_96 = arith.constant 0 : index
    %210 = vector.load %arg8[%c0_95, %c0_96] : memref<32x16xbf16, #tpu.memory_space<vmem>>, vector<32x16xbf16>
    %cst_97 = arith.constant dense<0.000000e+00> : vector<16x16xf32>
    %211 = tpu.matmul %209, %210, %cst_97 {dimension_numbers = #tpu.dot_dimension_numbers<[1], [0], [0], [1], [0, 0, 1, 1], [], []>} : vector<16x32xbf16>, vector<32x16xbf16>, vector<16x16xf32> -> vector<16x16xf32>
    %212 = vector.extract_strided_slice %211 {offsets = [0, 0], sizes = [16, 8], strides = [1, 1]} : vector<16x16xf32> to vector<16x8xf32>
    %213 = vector.extract_strided_slice %211 {offsets = [0, 8], sizes = [16, 8], strides = [1, 1]} : vector<16x16xf32> to vector<16x8xf32>
    %214 = arith.truncf %212 : vector<16x8xf32> to vector<16x8xbf16>
    %cst_98 = arith.constant dense<0.000000e+00> : vector<16x8xf32>
    %215 = tpu.matmul %0, %214, %cst_98 {dimension_numbers = #tpu.dot_dimension_numbers<[1], [0], [0], [1], [0, 0, 1, 1], [], []>} : vector<16x16xbf16>, vector<16x8xbf16>, vector<16x8xf32> -> vector<16x8xf32>
    %216 = arith.addf %215, %213 : vector<16x8xf32>
    %c0_99 = arith.constant 0 : index
    %217 = memref.load %arg9[%c0_99] : memref<8xf32, #tpu.memory_space<smem>>
    %218 = vector.broadcast %217 : f32 to vector<16x8xf32>
    %219 = arith.addf %216, %218 : vector<16x8xf32>
    %cst_100 = arith.constant 0.000000e+00 : f32
    %220 = vector.broadcast %cst_100 : f32 to vector<16x8xf32>
    %221 = arith.cmpf oge, %219, %220 : vector<16x8xf32>
    %cst_101 = arith.constant 2.000000e-01 : f32
    %222 = vector.broadcast %cst_101 : f32 to vector<16x8xf32>
    %223 = arith.mulf %222, %219 : vector<16x8xf32>
    %224 = arith.select %221, %219, %223 : vector<16x8xi1>, vector<16x8xf32>
    %cst_102 = arith.constant dense<0xFF800000> : vector<16xf32>
    %225 = vector.multi_reduction <maximumf>, %224, %cst_102 [1] : vector<16x8xf32> to vector<16xf32>
    %226 = vector.shape_cast %225 : vector<16xf32> to vector<16x1xf32>
    %227 = vector.broadcast %226 : vector<16x1xf32> to vector<16x8xf32>
    %228 = arith.subf %224, %227 : vector<16x8xf32>
    %229 = math.exp %228 : vector<16x8xf32>
    %cst_103 = arith.constant dense<0.000000e+00> : vector<16xf32>
    %230 = vector.multi_reduction <add>, %229, %cst_103 [1] : vector<16x8xf32> to vector<16xf32>
    %231 = vector.shape_cast %230 : vector<16xf32> to vector<16x1xf32>
    %232 = math.log %231 : vector<16x1xf32>
    %233 = vector.broadcast %232 : vector<16x1xf32> to vector<16x8xf32>
    %234 = arith.subf %228, %233 : vector<16x8xf32>
    %c0_104 = arith.constant 0 : index
    %c0_105 = arith.constant 0 : index
    %235 = vector.load %arg10[%c0_104, %c0_105] : memref<16x8xf32, #tpu.memory_space<vmem>>, vector<16x8xf32>
    tpu.vector_store %arg10[%c0_104, %c0_105], %234 {strides = array<i32>} : memref<16x8xf32, #tpu.memory_space<vmem>>, vector<16x8xf32>,
    return
  }
}

</mosaic_0001>

<llo_original>
// kernel: mul.8
$region0: #{mul.8}
  #allocation0 [shape = 's32[1]{0}', space=sflag, size = 0x4, scoped, tag = 'scoped memory for mul.8']
  %s0 = inlined_call_operand.vmem [shape: f32[48], index: 0, kind: input, shape index: {}]
  %s1 = inlined_call_operand.vmem [shape: f32[48], index: 1, kind: input, shape index: {}]
  %s2 = inlined_call_operand.vmem [shape: f32[48], index: 2, kind: output, shape index: {}]
  %v3 = vld [vmem:[%s0] sm:$0x1]
  %v4 = vld [vmem:[%s1] sm:$0x1]
  %5 = xla_tuple %v3, %v4
  %6 = xla_tuple %5
  %v7 = vmul.f32 %v3, %v4
  %8 = xla_tuple %v7
  %9 = vst [vmem:[%s2] sm:$0x1] %v7

// kernel: grn_forward.1
$region0: #{grn_forward.1}
  #allocation0 [shape = 'u32[]', space=smem, size = 0x4, offset = 0x4, fixed_abs, tag = 'smem constant byte address 0x4 - core index']
  #allocation1 [shape = 'u32[144,128]{1,0:T(1,128)}', space=vmem, size = 0x12000, scoped, tag = 'internal scratch']
  %s0 = inlined_call_operand.vmem [shape: bf16[16,8], index: 0, kind: input, shape index: {}]
  %s1 = inlined_call_operand.vmem [shape: bf16[16,16], index: 1, kind: input, shape index: {}]
  %s2 = inlined_call_operand.vmem [shape: bf16[8,256], index: 2, kind: input, shape index: {}]
  %s3 = inlined_call_operand.vmem [shape: bf16[64,64], index: 3, kind: input, shape index: {}]
  %s4 = inlined_call_operand.vmem [shape: f32[32], index: 4, kind: input, shape index: {}]
  %s5 = inlined_call_operand.vmem [shape: bf16[4,32,256], index: 5, kind: input, shape index: {}]
  %s6 = inlined_call_operand.vmem [shape: bf16[4,64,64], index: 6, kind: input, shape index: {}]
  %s7 = inlined_call_operand.vmem [shape: f32[4,32], index: 7, kind: input, shape index: {}]
  %s8 = inlined_call_operand.vmem [shape: bf16[32,16], index: 8, kind: input, shape index: {}]
  %s9 = inlined_call_operand.vmem [shape: f32[8], index: 9, kind: input, shape index: {}]
  %s10 = inlined_call_operand.vmem [shape: f32[16,8], index: 10, kind: output, shape index: {}]
  %s11 = sld [smem:[#allocation0]]
  $region62: #{grn_forward.1} parent=0
    _
  %s13 = ssub.s32 1, %s11
  %s14 = scalar_select 0, %s13, %s11
  $region1: #{grn_forward.1} parent=0
    #allocation2 [shape = 'u8[512]{0}', space=smem, size = 0x200, scoped, tag = 'input window, operand 4, single buffered']
    #allocation3 [shape = 's32[1]{0}', space=sflag, size = 0x4, scoped, tag = 'scoped memory for grn_forward.1']
    #allocation4 [shape = 'u8[2048]{0}', space=smem, size = 0x800, scoped, tag = 'input window, operand 7, single buffered']
    #allocation5 [shape = 's32[1]{0}', space=sflag, size = 0x4, scoped, tag = 'scoped memory for grn_forward.1']
    #allocation6 [shape = 'u8[512]{0}', space=smem, size = 0x200, scoped, tag = 'input window, operand 9, single buffered']
    %15 = vsyncpa [#allocation3], 0
    %16 = vsyncpa [#allocation5], 0
    // Predicated region
    $region2: #{grn_forward.1} parent=1 // pred_check
      _
    $region3: #{grn_forward.1} parent=1 // pred_check_branch
      %18 = sbr.rel (0) target = $region5
    $region4: #{grn_forward.1} parent=1 // pred_region
      _
    $region5: #{grn_forward.1} parent=1 // pred_fallthru
      _
    // Predicated region
    $region6: #{grn_forward.1} parent=1 // pred_check
      _
    $region7: #{grn_forward.1} parent=1 // pred_check_branch
      %20 = sbr.rel (0) target = $region9
    $region8: #{grn_forward.1} parent=1 // pred_region
      _
    $region9: #{grn_forward.1} parent=1 // pred_fallthru
      _
    // Predicated region
    $region10: #{grn_forward.1} parent=1 // pred_check
      _
    $region11: #{grn_forward.1} parent=1 // pred_check_branch
      %22 = sbr.rel (0) target = $region13
    $region12: #{grn_forward.1} parent=1 // pred_region
      _
    $region13: #{grn_forward.1} parent=1 // pred_fallthru
      _
    // Predicated region
    $region14: #{grn_forward.1} parent=1 // pred_check
      _
    $region15: #{grn_forward.1} parent=1 // pred_check_branch
      %24 = sbr.rel (0) target = $region17
    $region16: #{grn_forward.1} parent=1 // pred_region
      _
    $region17: #{grn_forward.1} parent=1 // pred_fallthru
      _
    // Predicated region
    $region18: #{grn_forward.1} parent=1 // pred_check
      _
    $region19: #{grn_forward.1} parent=1 // pred_check_branch
      %26 = sbr.rel (0) target = $region21
    $region20: #{grn_forward.1} parent=1 // pred_region
      %s28 = ssub.s32 16, 16
      %29 = vsyncadd [#allocation3], %s28
      %s31 = sshll.u32 %s4, 4
      %s32 = int_to_ptr.vmem [resolvable:$true] %s31
      %34 = dma.vmem_to_smem %s32, 16, [#allocation2], [#allocation3]
    $region21: #{grn_forward.1} parent=1 // pred_fallthru
      _
    // Predicated region
    $region22: #{grn_forward.1} parent=1 // pred_check
      _
    $region23: #{grn_forward.1} parent=1 // pred_check_branch
      %36 = sbr.rel (0) target = $region25
    $region24: #{grn_forward.1} parent=1 // pred_region
      _
    $region25: #{grn_forward.1} parent=1 // pred_fallthru
      _
    // Predicated region
    $region26: #{grn_forward.1} parent=1 // pred_check
      _
    $region27: #{grn_forward.1} parent=1 // pred_check_branch
      %38 = sbr.rel (0) target = $region29
    $region28: #{grn_forward.1} parent=1 // pred_region
      _
    $region29: #{grn_forward.1} parent=1 // pred_fallthru
      _
    // Predicated region
    $region30: #{grn_forward.1} parent=1 // pred_check
      _
    $region31: #{grn_forward.1} parent=1 // pred_check_branch
      %40 = sbr.rel (0) target = $region33
    $region32: #{grn_forward.1} parent=1 // pred_region
      %s42 = ssub.s32 64, 64
      %43 = vsyncadd [#allocation5], %s42
      %s45 = sshll.u32 %s7, 4
      %s46 = int_to_ptr.vmem [resolvable:$true] %s45
      %48 = dma.vmem_to_smem %s46, 64, [#allocation4], [#allocation5]
    $region33: #{grn_forward.1} parent=1 // pred_fallthru
      _
    // Predicated region
    $region34: #{grn_forward.1} parent=1 // pred_check
      _
    $region35: #{grn_forward.1} parent=1 // pred_check_branch
      %50 = sbr.rel (0) target = $region37
    $region36: #{grn_forward.1} parent=1 // pred_region
      _
    $region37: #{grn_forward.1} parent=1 // pred_fallthru
      _
    // Predicated region
    $region38: #{grn_forward.1} parent=1 // pred_check
      _
    $region39: #{grn_forward.1} parent=1 // pred_check_branch
      %52 = sbr.rel (0) target = $region41
    $region40: #{grn_forward.1} parent=1 // pred_region
      %s54 = ssub.s32 16, 16
      %55 = vsyncadd [#allocation5], %s54
      %s57 = sshll.u32 %s9, 4
      %s58 = int_to_ptr.vmem [resolvable:$true] %s57
      %60 = dma.vmem_to_smem %s58, 16, [#allocation6], [#allocation5]
    $region41: #{grn_forward.1} parent=1 // pred_fallthru
      _
    // Predicated region
    $region42: #{grn_forward.1} parent=1 // pred_check
      _
    $region43: #{grn_forward.1} parent=1 // pred_check_branch
      %62 = sbr.rel (0) target = $region45
    $region44: #{grn_forward.1} parent=1 // pred_region
      %63 = dma.done [#allocation3], 16
    $region45: #{grn_forward.1} parent=1 // pred_fallthru
      _
    // Predicated region
    $region46: #{grn_forward.1} parent=1 // pred_check
      _
    $region47: #{grn_forward.1} parent=1 // pred_check_branch
      %65 = sbr.rel (0) target = $region49
    $region48: #{grn_forward.1} parent=1 // pred_region
      %66 = dma.done [#allocation5], 64
    $region49: #{grn_forward.1} parent=1 // pred_fallthru
      _
    // Predicated region
    $region50: #{grn_forward.1} parent=1 // pred_check
      _
    $region51: #{grn_forward.1} parent=1 // pred_check_branch
      %68 = sbr.rel (0) target = $region53
    $region52: #{grn_forward.1} parent=1 // pred_region
      %69 = dma.done [#allocation5], 16
    $region53: #{grn_forward.1} parent=1 // pred_fallthru
      _
    %70 = sfence
    %v72 = vld [vmem:[%s1] sm:$0xf]
    %v73 = vld [vmem:[%s1 + $0x4] sm:$0xf]
    %v74 = vld [vmem:[%s0] sm:$0xf]
    %v75 = vld [vmem:[%s0 + $0x4] sm:$0xf]
    %v76 = vld [vmem:[%s2] sm:$0xff]
    %v77 = vld [vmem:[%s3] sm:$0xf]
    %v78 = vld [vmem:[%s3 + $0x4] sm:$0xf]
    %v79 = vld [vmem:[%s3 + $0x8] sm:$0xf]
    %v80 = vld [vmem:[%s3 + $0xc] sm:$0xf]
    %v81 = vld [vmem:[%s3 + $0x10] sm:$0xf]
    %v82 = vld [vmem:[%s3 + $0x14] sm:$0xf]
    %v83 = vld [vmem:[%s3 + $0x18] sm:$0xf]
    %v84 = vld [vmem:[%s3 + $0x1c] sm:$0xf]
    %s85 = sld [smem:[#allocation2]]
    %s86 = sld [smem:[#allocation2 + $0x1]]
    %v89 = vunpack.c.l.b16 %v74
    %v90 = vunpack.c.l.b16 %v75
    %v91 = vpack.c.b16 %v90, %v89
    %v93 = vunpack.c.l.b16 %v76
    %v94 = vunpack.c.h.b16 %v76
    %v95 = vpack.c.b16 %v93, %v93
    %v96 = vpack.c.b16 %v94, %v94
    %vm97 = vcmask 64512
    %v99 = vsel %vm97, %v91, 0
    %vm101 = vcmask 1043456
    %v103 = vsel %vm101, %v95, 0
    %v106 = vsel %vm101, %v96, 0
    %108 = vmatprep.subr.bf16.mxu0 %v106
    %109 = vmatpush1.bf16.msra.mxu0 %v103
    %110 = vmatprep.subr.bf16.mxu0 0
    %111 = vmatpush1.bf16.msra.mxu0 0
    %112 = vmatprep.subr.bf16.mxu0 0
    %113 = vmatpush1.bf16.msra.mxu0 0
    %114 = vmatprep.subr.bf16.mxu0 0
    %115 = vmatpush1.bf16.msra.mxu0 0
    %116 = vmatprep.subr.bf16.mxu0 0
    %117 = vmatpush1.bf16.msra.mxu0 0
    %118 = vmatprep.subr.bf16.mxu0 0
    %119 = vmatpush1.bf16.msra.mxu0 0
    %120 = vmatprep.subr.bf16.mxu0 0
    %121 = vmatpush1.bf16.msra.mxu0 0
    %122 = vmatprep.subr.bf16.mxu0 0
    %123 = vmatpush1.bf16.msra.mxu0 0
    %124 = vmatprep.subr.bf16.mxu0 0
    %125 = vmatpush1.bf16.msra.mxu0 0
    %126 = vmatprep.subr.bf16.mxu0 0
    %127 = vmatpush1.bf16.msra.mxu0 0
    %128 = vmatprep.subr.bf16.mxu0 0
    %129 = vmatpush1.bf16.msra.mxu0 0
    %130 = vmatprep.subr.bf16.mxu0 0
    %131 = vmatpush1.bf16.msra.mxu0 0
    %132 = vmatprep.subr.bf16.mxu0 0
    %133 = vmatpush1.bf16.msra.mxu0 0
    %134 = vmatprep.subr.bf16.mxu0 0
    %135 = vmatpush1.bf16.msra.mxu0 0
    %136 = vmatprep.subr.bf16.mxu0 0
    %137 = vmatpush1.bf16.msra.mxu0 0
    %138 = vmatprep.subr.bf16.mxu0 0
    %139 = vmatpush1.bf16.msra.mxu0 0
    %140 = vmatprep.mubr.bf16.mxu0 0
    %141 = vmatmul.mubr.bf16.gmra.mrb[0].mxu0 %v99
    %v142 = vpop.f32.mrb[0].mxu0
    %v143 = vadd.f32 0.0, %v142
    %v144 = vpop.f32.mrb[0].mxu0
    %v145 = vadd.f32 0.0, %v144
    %v146 = vpop.f32.mrb[0].mxu0
    %v147 = vadd.f32 0.0, %v146
    %v148 = vpop.f32.mrb[0].mxu0
    %v149 = vadd.f32 0.0, %v148
    %150 = vdwg.mxu0
    %v151 = vpack.c.bf16 %v147, %v143
    %v154 = vunpack.c.l.b16 %v72
    %v155 = vunpack.c.l.b16 %v73
    %v156 = vpack.c.b16 %v155, %v154
    %159 = vrot.lane.b32.xlu0 %v143, 64
    %v160 = vpop.permute.xlu0 %159
    %161 = vrot.lane.b32.xlu0 %v147, 64
    %v162 = vpop.permute.xlu0 %161
    %vm165 = vcmask 130048
    %v167 = vsel %vm165, %v156, 0
    %169 = vmatprep.subr.bf16.mxu0 0
    %170 = vmatpush1.bf16.msra.mxu0 %v151
    %171 = vmatprep.subr.bf16.mxu0 0
    %172 = vmatpush1.bf16.msra.mxu0 0
    %173 = vmatprep.subr.bf16.mxu0 0
    %174 = vmatpush1.bf16.msra.mxu0 0
    %175 = vmatprep.subr.bf16.mxu0 0
    %176 = vmatpush1.bf16.msra.mxu0 0
    %177 = vmatprep.subr.bf16.mxu0 0
    %178 = vmatpush1.bf16.msra.mxu0 0
    %179 = vmatprep.subr.bf16.mxu0 0
    %180 = vmatpush1.bf16.msra.mxu0 0
    %181 = vmatprep.subr.bf16.mxu0 0
    %182 = vmatpush1.bf16.msra.mxu0 0
    %183 = vmatprep.subr.bf16.mxu0 0
    %184 = vmatpush1.bf16.msra.mxu0 0
    %185 = vmatprep.subr.bf16.mxu0 0
    %186 = vmatpush1.bf16.msra.mxu0 0
    %187 = vmatprep.subr.bf16.mxu0 0
    %188 = vmatpush1.bf16.msra.mxu0 0
    %189 = vmatprep.subr.bf16.mxu0 0
    %190 = vmatpush1.bf16.msra.mxu0 0
    %191 = vmatprep.subr.bf16.mxu0 0
    %192 = vmatpush1.bf16.msra.mxu0 0
    %193 = vmatprep.subr.bf16.mxu0 0
    %194 = vmatpush1.bf16.msra.mxu0 0
    %195 = vmatprep.subr.bf16.mxu0 0
    %196 = vmatpush1.bf16.msra.mxu0 0
    %197 = vmatprep.subr.bf16.mxu0 0
    %198 = vmatpush1.bf16.msra.mxu0 0
    %199 = vmatprep.subr.bf16.mxu0 0
    %200 = vmatpush1.bf16.msra.mxu0 0
    %201 = vmatprep.mubr.bf16.mxu0 0
    %202 = vmatmul.mubr.bf16.gmra.mrb[0].mxu0 %v167
    %v203 = vpop.f32.mrb[0].mxu0
    %v204 = vadd.f32 %v160, %v203
    %v205 = vpop.f32.mrb[0].mxu0
    %v206 = vpop.f32.mrb[0].mxu0
    %v207 = vadd.f32 %v162, %v206
    %v208 = vpop.f32.mrb[0].mxu0
    %209 = vdwg.mxu0
    %v210 = vstv %s85
    %v211 = vadd.f32 %v204, %v210
    %v212 = vadd.f32 %v207, %v210
    %vm213 = vcmp.ge.f32.partialorder %v211, 0.0
    %vm214 = vcmp.ge.f32.partialorder %v212, 0.0
    %v215 = vmul.f32 %v211, 0.2
    %v216 = vmul.f32 %v212, 0.2
    %v217 = vsel %vm213, %v211, %v215
    %v218 = vsel %vm214, %v212, %v216
    %v219 = vpack.c.bf16 %v218, %v217
    %v228 = vunpack.c.l.b16 %v77
    %v229 = vunpack.c.l.b16 %v78
    %v230 = vunpack.c.l.b16 %v79
    %v231 = vunpack.c.l.b16 %v80
    %v232 = vunpack.c.l.b16 %v81
    %v233 = vunpack.c.l.b16 %v82
    %v234 = vunpack.c.l.b16 %v83
    %v235 = vunpack.c.l.b16 %v84
    %v236 = vpack.c.b16 %v229, %v228
    %v237 = vpack.c.b16 %v231, %v230
    %v238 = vpack.c.b16 %v233, %v232
    %v239 = vpack.c.b16 %v235, %v234
    %vm244 = vcmask 523264
    %v246 = vsel %vm244, %v219, 0
    %248 = vmatprep.subr.bf16.mxu0 0
    %249 = vmatpush1.bf16.msra.mxu0 %v236
    %250 = vmatprep.subr.bf16.mxu0 0
    %251 = vmatpush1.bf16.msra.mxu0 %v237
    %252 = vmatprep.subr.bf16.mxu0 0
    %253 = vmatpush1.bf16.msra.mxu0 %v238
    %254 = vmatprep.subr.bf16.mxu0 0
    %255 = vmatpush1.bf16.msra.mxu0 %v239
    %256 = vmatprep.subr.bf16.mxu0 0
    %257 = vmatpush1.bf16.msra.mxu0 0
    %258 = vmatprep.subr.bf16.mxu0 0
    %259 = vmatpush1.bf16.msra.mxu0 0
    %260 = vmatprep.subr.bf16.mxu0 0
    %261 = vmatpush1.bf16.msra.mxu0 0
    %262 = vmatprep.subr.bf16.mxu0 0
    %263 = vmatpush1.bf16.msra.mxu0 0
    %264 = vmatprep.subr.bf16.mxu0 0
    %265 = vmatpush1.bf16.msra.mxu0 0
    %266 = vmatprep.subr.bf16.mxu0 0
    %267 = vmatpush1.bf16.msra.mxu0 0
    %268 = vmatprep.subr.bf16.mxu0 0
    %269 = vmatpush1.bf16.msra.mxu0 0
    %270 = vmatprep.subr.bf16.mxu0 0
    %271 = vmatpush1.bf16.msra.mxu0 0
    %272 = vmatprep.subr.bf16.mxu0 0
    %273 = vmatpush1.bf16.msra.mxu0 0
    %274 = vmatprep.subr.bf16.mxu0 0
    %275 = vmatpush1.bf16.msra.mxu0 0
    %276 = vmatprep.subr.bf16.mxu0 0
    %277 = vmatpush1.bf16.msra.mxu0 0
    %278 = vmatprep.subr.bf16.mxu0 0
    %279 = vmatpush1.bf16.msra.mxu0 0
    %280 = vmatprep.mubr.bf16.mxu0 0
    %281 = vmatmul.mubr.bf16.gmra.mrb[0].mxu0 %v246
    %v282 = vpop.f32.mrb[0].mxu0
    %v283 = vadd.f32 0.0, %v282
    %v284 = vpop.f32.mrb[0].mxu0
    %v285 = vpop.f32.mrb[0].mxu0
    %v286 = vadd.f32 0.0, %v285
    %v287 = vpop.f32.mrb[0].mxu0
    %288 = vdwg.mxu0
    %v289 = vpack.c.bf16 %v286, %v283
    %290 = vmatprep.subr.bf16.mxu0 0
    %291 = vmatpush1.bf16.msra.mxu0 %v289
    %292 = vmatprep.subr.bf16.mxu0 0
    %293 = vmatpush1.bf16.msra.mxu0 0
    %294 = vmatprep.subr.bf16.mxu0 0
    %295 = vmatpush1.bf16.msra.mxu0 0
    %296 = vmatprep.subr.bf16.mxu0 0
    %297 = vmatpush1.bf16.msra.mxu0 0
    %298 = vmatprep.subr.bf16.mxu0 0
    %299 = vmatpush1.bf16.msra.mxu0 0
    %300 = vmatprep.subr.bf16.mxu0 0
    %301 = vmatpush1.bf16.msra.mxu0 0
    %302 = vmatprep.subr.bf16.mxu0 0
    %303 = vmatpush1.bf16.msra.mxu0 0
    %304 = vmatprep.subr.bf16.mxu0 0
    %305 = vmatpush1.bf16.msra.mxu0 0
    %306 = vmatprep.subr.bf16.mxu0 0
    %307 = vmatpush1.bf16.msra.mxu0 0
    %308 = vmatprep.subr.bf16.mxu0 0
    %309 = vmatpush1.bf16.msra.mxu0 0
    %310 = vmatprep.subr.bf16.mxu0 0
    %311 = vmatpush1.bf16.msra.mxu0 0
    %312 = vmatprep.subr.bf16.mxu0 0
    %313 = vmatpush1.bf16.msra.mxu0 0
    %314 = vmatprep.subr.bf16.mxu0 0
    %315 = vmatpush1.bf16.msra.mxu0 0
    %316 = vmatprep.subr.bf16.mxu0 0
    %317 = vmatpush1.bf16.msra.mxu0 0
    %318 = vmatprep.subr.bf16.mxu0 0
    %319 = vmatpush1.bf16.msra.mxu0 0
    %320 = vmatprep.subr.bf16.mxu0 0
    %321 = vmatpush1.bf16.msra.mxu0 0
    %322 = vmatprep.mubr.bf16.mxu0 0
    %323 = vmatmul.mubr.bf16.gmra.mrb[0].mxu0 %v167
    %v324 = vpop.f32.mrb[0].mxu0
    %v325 = vadd.f32 %v145, %v324
    %v326 = vpop.f32.mrb[0].mxu0
    %v327 = vpop.f32.mrb[0].mxu0
    %v328 = vadd.f32 %v149, %v327
    %v329 = vpop.f32.mrb[0].mxu0
    %330 = vdwg.mxu0
    %v331 = vmul.f32 %v145, 0.6
    %v332 = vmul.f32 %v149, 0.6
    %335 = vrot.lane.b32.xlu0 %v331, 64
    %v336 = vpop.permute.xlu0 %335
    %337 = vrot.lane.b32.xlu0 %v332, 64
    %v338 = vpop.permute.xlu0 %337
    %v341 = vadd.f32 %v325, %v336
    %v342 = vadd.f32 %v328, %v338
    %v343 = vstv %s86
    %v344 = vadd.f32 %v341, %v343
    %v345 = vadd.f32 %v342, %v343
    %vm346 = vcmp.ge.f32.partialorder %v344, 0.0
    %vm347 = vcmp.ge.f32.partialorder %v345, 0.0
    %v348 = vmul.f32 %v344, 0.2
    %v349 = vmul.f32 %v345, 0.2
    %v350 = vsel %vm346, %v344, %v348
    %v351 = vsel %vm347, %v345, %v349
    %354 = vrot.lane.b32.xlu0 %v350, 96
    %v355 = vpop.permute.xlu0 %354
    %356 = vrot.lane.b32.xlu0 %v351, 96
    %v357 = vpop.permute.xlu0 %356
    %v360 = vadd.f32 %v350, %v355
    %v361 = vadd.f32 %v351, %v357
    %v362 = vmax.f32 %v360, 0.0
    %v363 = vmax.f32 %v361, 0.0
    %v364 = vpack.c.bf16 %v363, %v362
    %v365 = vld [vmem:[%s5] sm:$0xff]
    %v366 = vld [vmem:[%s5 + $0x8] sm:$0xff]
    %v367 = vld [vmem:[%s5 + $0x10] sm:$0xff]
    %v368 = vld [vmem:[%s5 + $0x18] sm:$0xff]
    %v369 = vld [vmem:[%s6] sm:$0xf]
    %v370 = vld [vmem:[%s6 + $0x4] sm:$0xf]
    %v371 = vld [vmem:[%s6 + $0x8] sm:$0xf]
    %v372 = vld [vmem:[%s6 + $0xc] sm:$0xf]
    %v373 = vld [vmem:[%s6 + $0x10] sm:$0xf]
    %v374 = vld [vmem:[%s6 + $0x14] sm:$0xf]
    %v375 = vld [vmem:[%s6 + $0x18] sm:$0xf]
    %v376 = vld [vmem:[%s6 + $0x1c] sm:$0xf]
    %s377 = sld [smem:[#allocation4]]
    %s378 = sld [smem:[#allocation4 + $0x1]]
    %v383 = vunpack.c.l.b16 %v365
    %v384 = vunpack.c.h.b16 %v365
    %v385 = vunpack.c.l.b16 %v366
    %v386 = vunpack.c.h.b16 %v366
    %v387 = vunpack.c.l.b16 %v367
    %v388 = vunpack.c.h.b16 %v367
    %v389 = vunpack.c.l.b16 %v368
    %v390 = vunpack.c.h.b16 %v368
    %v391 = vpack.c.b16 %v385, %v383
    %v392 = vpack.c.b16 %v386, %v384
    %v393 = vpack.c.b16 %v389, %v387
    %v394 = vpack.c.b16 %v390, %v388
    %vm399 = vcmask 261120
    %v401 = vsel %vm399, %v364, 0
    %403 = vmatprep.subr.bf16.mxu0 %v392
    %404 = vmatpush1.bf16.msra.mxu0 %v391
    %405 = vmatprep.subr.bf16.mxu0 %v394
    %406 = vmatpush1.bf16.msra.mxu0 %v393
    %407 = vmatprep.subr.bf16.mxu0 0
    %408 = vmatpush1.bf16.msra.mxu0 0
    %409 = vmatprep.subr.bf16.mxu0 0
    %410 = vmatpush1.bf16.msra.mxu0 0
    %411 = vmatprep.subr.bf16.mxu0 0
    %412 = vmatpush1.bf16.msra.mxu0 0
    %413 = vmatprep.subr.bf16.mxu0 0
    %414 = vmatpush1.bf16.msra.mxu0 0
    %415 = vmatprep.subr.bf16.mxu0 0
    %416 = vmatpush1.bf16.msra.mxu0 0
    %417 = vmatprep.subr.bf16.mxu0 0
    %418 = vmatpush1.bf16.msra.mxu0 0
    %419 = vmatprep.subr.bf16.mxu0 0
    %420 = vmatpush1.bf16.msra.mxu0 0
    %421 = vmatprep.subr.bf16.mxu0 0
    %422 = vmatpush1.bf16.msra.mxu0 0
    %423 = vmatprep.subr.bf16.mxu0 0
    %424 = vmatpush1.bf16.msra.mxu0 0
    %425 = vmatprep.subr.bf16.mxu0 0
    %426 = vmatpush1.bf16.msra.mxu0 0
    %427 = vmatprep.subr.bf16.mxu0 0
    %428 = vmatpush1.bf16.msra.mxu0 0
    %429 = vmatprep.subr.bf16.mxu0 0
    %430 = vmatpush1.bf16.msra.mxu0 0
    %431 = vmatprep.subr.bf16.mxu0 0
    %432 = vmatpush1.bf16.msra.mxu0 0
    %433 = vmatprep.subr.bf16.mxu0 0
    %434 = vmatpush1.bf16.msra.mxu0 0
    %435 = vmatprep.mubr.bf16.mxu0 0
    %436 = vmatmul.mubr.bf16.gmra.mrb[0].mxu0 %v401
    %v437 = vpop.f32.mrb[0].mxu0
    %v438 = vadd.f32 0.0, %v437
    %v439 = vpop.f32.mrb[0].mxu0
    %v440 = vadd.f32 0.0, %v439
    %v441 = vpop.f32.mrb[0].mxu0
    %v442 = vadd.f32 0.0, %v441
    %v443 = vpop.f32.mrb[0].mxu0
    %v444 = vadd.f32 0.0, %v443
    %445 = vdwg.mxu0
    %v446 = vpack.c.bf16 %v442, %v438
    %449 = vrot.lane.b32.xlu0 %v438, 64
    %v450 = vpop.permute.xlu0 %449
    %451 = vrot.lane.b32.xlu0 %v442, 64
    %v452 = vpop.permute.xlu0 %451
    %455 = vmatprep.subr.bf16.mxu0 0
    %456 = vmatpush1.bf16.msra.mxu0 %v446
    %457 = vmatprep.subr.bf16.mxu0 0
    %458 = vmatpush1.bf16.msra.mxu0 0
    %459 = vmatprep.subr.bf16.mxu0 0
    %460 = vmatpush1.bf16.msra.mxu0 0
    %461 = vmatprep.subr.bf16.mxu0 0
    %462 = vmatpush1.bf16.msra.mxu0 0
    %463 = vmatprep.subr.bf16.mxu0 0
    %464 = vmatpush1.bf16.msra.mxu0 0
    %465 = vmatprep.subr.bf16.mxu0 0
    %466 = vmatpush1.bf16.msra.mxu0 0
    %467 = vmatprep.subr.bf16.mxu0 0
    %468 = vmatpush1.bf16.msra.mxu0 0
    %469 = vmatprep.subr.bf16.mxu0 0
    %470 = vmatpush1.bf16.msra.mxu0 0
    %471 = vmatprep.subr.bf16.mxu0 0
    %472 = vmatpush1.bf16.msra.mxu0 0
    %473 = vmatprep.subr.bf16.mxu0 0
    %474 = vmatpush1.bf16.msra.mxu0 0
    %475 = vmatprep.subr.bf16.mxu0 0
    %476 = vmatpush1.bf16.msra.mxu0 0
    %477 = vmatprep.subr.bf16.mxu0 0
    %478 = vmatpush1.bf16.msra.mxu0 0
    %479 = vmatprep.subr.bf16.mxu0 0
    %480 = vmatpush1.bf16.msra.mxu0 0
    %481 = vmatprep.subr.bf16.mxu0 0
    %482 = vmatpush1.bf16.msra.mxu0 0
    %483 = vmatprep.subr.bf16.mxu0 0
    %484 = vmatpush1.bf16.msra.mxu0 0
    %485 = vmatprep.subr.bf16.mxu0 0
    %486 = vmatpush1.bf16.msra.mxu0 0
    %487 = vmatprep.mubr.bf16.mxu0 0
    %488 = vmatmul.mubr.bf16.gmra.mrb[0].mxu0 %v167
    %v489 = vpop.f32.mrb[0].mxu0
    %v490 = vadd.f32 %v450, %v489
    %v491 = vpop.f32.mrb[0].mxu0
    %v492 = vpop.f32.mrb[0].mxu0
    %v493 = vadd.f32 %v452, %v492
    %v494 = vpop.f32.mrb[0].mxu0
    %495 = vdwg.mxu0
    %v496 = vstv %s377
    %v497 = vadd.f32 %v490, %v496
    %v498 = vadd.f32 %v493, %v496
    %vm499 = vcmp.ge.f32.partialorder %v497, 0.0
    %vm500 = vcmp.ge.f32.partialorder %v498, 0.0
    %v501 = vmul.f32 %v497, 0.2
    %v502 = vmul.f32 %v498, 0.2
    %v503 = vsel %vm499, %v497, %v501
    %v504 = vsel %vm500, %v498, %v502
    %v505 = vpack.c.bf16 %v504, %v503
    %v514 = vunpack.c.l.b16 %v369
    %v515 = vunpack.c.l.b16 %v370
    %v516 = vunpack.c.l.b16 %v371
    %v517 = vunpack.c.l.b16 %v372
    %v518 = vunpack.c.l.b16 %v373
    %v519 = vunpack.c.l.b16 %v374
    %v520 = vunpack.c.l.b16 %v375
    %v521 = vunpack.c.l.b16 %v376
    %v522 = vpack.c.b16 %v515, %v514
    %v523 = vpack.c.b16 %v517, %v516
    %v524 = vpack.c.b16 %v519, %v518
    %v525 = vpack.c.b16 %v521, %v520
    %v531 = vsel %vm244, %v505, 0
    %533 = vmatprep.subr.bf16.mxu0 0
    %534 = vmatpush1.bf16.msra.mxu0 %v522
    %535 = vmatprep.subr.bf16.mxu0 0
    %536 = vmatpush1.bf16.msra.mxu0 %v523
    %537 = vmatprep.subr.bf16.mxu0 0
    %538 = vmatpush1.bf16.msra.mxu0 %v524
    %539 = vmatprep.subr.bf16.mxu0 0
    %540 = vmatpush1.bf16.msra.mxu0 %v525
    %541 = vmatprep.subr.bf16.mxu0 0
    %542 = vmatpush1.bf16.msra.mxu0 0
    %543 = vmatprep.subr.bf16.mxu0 0
    %544 = vmatpush1.bf16.msra.mxu0 0
    %545 = vmatprep.subr.bf16.mxu0 0
    %546 = vmatpush1.bf16.msra.mxu0 0
    %547 = vmatprep.subr.bf16.mxu0 0
    %548 = vmatpush1.bf16.msra.mxu0 0
    %549 = vmatprep.subr.bf16.mxu0 0
    %550 = vmatpush1.bf16.msra.mxu0 0
    %551 = vmatprep.subr.bf16.mxu0 0
    %552 = vmatpush1.bf16.msra.mxu0 0
    %553 = vmatprep.subr.bf16.mxu0 0
    %554 = vmatpush1.bf16.msra.mxu0 0
    %555 = vmatprep.subr.bf16.mxu0 0
    %556 = vmatpush1.bf16.msra.mxu0 0
    %557 = vmatprep.subr.bf16.mxu0 0
    %558 = vmatpush1.bf16.msra.mxu0 0
    %559 = vmatprep.subr.bf16.mxu0 0
    %560 = vmatpush1.bf16.msra.mxu0 0
    %561 = vmatprep.subr.bf16.mxu0 0
    %562 = vmatpush1.bf16.msra.mxu0 0
    %563 = vmatprep.subr.bf16.mxu0 0
    %564 = vmatpush1.bf16.msra.mxu0 0
    %565 = vmatprep.mubr.bf16.mxu0 0
    %566 = vmatmul.mubr.bf16.gmra.mrb[0].mxu0 %v531
    %v567 = vpop.f32.mrb[0].mxu0
    %v568 = vadd.f32 0.0, %v567
    %v569 = vpop.f32.mrb[0].mxu0
    %v570 = vpop.f32.mrb[0].mxu0
    %v571 = vadd.f32 0.0, %v570
    %v572 = vpop.f32.mrb[0].mxu0
    %573 = vdwg.mxu0
    %v574 = vpack.c.bf16 %v571, %v568
    %575 = vmatprep.subr.bf16.mxu0 0
    %576 = vmatpush1.bf16.msra.mxu0 %v574
    %577 = vmatprep.subr.bf16.mxu0 0
    %578 = vmatpush1.bf16.msra.mxu0 0
    %579 = vmatprep.subr.bf16.mxu0 0
    %580 = vmatpush1.bf16.msra.mxu0 0
    %581 = vmatprep.subr.bf16.mxu0 0
    %582 = vmatpush1.bf16.msra.mxu0 0
    %583 = vmatprep.subr.bf16.mxu0 0
    %584 = vmatpush1.bf16.msra.mxu0 0
    %585 = vmatprep.subr.bf16.mxu0 0
    %586 = vmatpush1.bf16.msra.mxu0 0
    %587 = vmatprep.subr.bf16.mxu0 0
    %588 = vmatpush1.bf16.msra.mxu0 0
    %589 = vmatprep.subr.bf16.mxu0 0
    %590 = vmatpush1.bf16.msra.mxu0 0
    %591 = vmatprep.subr.bf16.mxu0 0
    %592 = vmatpush1.bf16.msra.mxu0 0
    %593 = vmatprep.subr.bf16.mxu0 0
    %594 = vmatpush1.bf16.msra.mxu0 0
    %595 = vmatprep.subr.bf16.mxu0 0
    %596 = vmatpush1.bf16.msra.mxu0 0
    %597 = vmatprep.subr.bf16.mxu0 0
    %598 = vmatpush1.bf16.msra.mxu0 0
    %599 = vmatprep.subr.bf16.mxu0 0
    %600 = vmatpush1.bf16.msra.mxu0 0
    %601 = vmatprep.subr.bf16.mxu0 0
    %602 = vmatpush1.bf16.msra.mxu0 0
    %603 = vmatprep.subr.bf16.mxu0 0
    %604 = vmatpush1.bf16.msra.mxu0 0
    %605 = vmatprep.subr.bf16.mxu0 0
    %606 = vmatpush1.bf16.msra.mxu0 0
    %607 = vmatprep.mubr.bf16.mxu0 0
    %608 = vmatmul.mubr.bf16.gmra.mrb[0].mxu0 %v167
    %v609 = vpop.f32.mrb[0].mxu0
    %v610 = vadd.f32 %v440, %v609
    %v611 = vpop.f32.mrb[0].mxu0
    %v612 = vpop.f32.mrb[0].mxu0
    %v613 = vadd.f32 %v444, %v612
    %v614 = vpop.f32.mrb[0].mxu0
    %615 = vdwg.mxu0
    %v616 = vmul.f32 %v440, 0.6
    %v617 = vmul.f32 %v444, 0.6
    %620 = vrot.lane.b32.xlu0 %v616, 64
    %v621 = vpop.permute.xlu0 %620
    %622 = vrot.lane.b32.xlu0 %v617, 64
    %v623 = vpop.permute.xlu0 %622
    %v626 = vadd.f32 %v610, %v621
    %v627 = vadd.f32 %v613, %v623
    %v628 = vstv %s378
    %v629 = vadd.f32 %v626, %v628
    %v630 = vadd.f32 %v627, %v628
    %vm631 = vcmp.ge.f32.partialorder %v629, 0.0
    %vm632 = vcmp.ge.f32.partialorder %v630, 0.0
    %v633 = vmul.f32 %v629, 0.2
    %v634 = vmul.f32 %v630, 0.2
    %v635 = vsel %vm631, %v629, %v633
    %v636 = vsel %vm632, %v630, %v634
    %639 = vrot.lane.b32.xlu0 %v635, 96
    %v640 = vpop.permute.xlu0 %639
    %641 = vrot.lane.b32.xlu0 %v636, 96
    %v642 = vpop.permute.xlu0 %641
    %v645 = vadd.f32 %v635, %v640
    %v646 = vadd.f32 %v636, %v642
    %v647 = vmax.f32 %v645, 0.0
    %v648 = vmax.f32 %v646, 0.0
    %v649 = vpack.c.bf16 %v648, %v647
    %s650 = scalar_lea.vmem %s5, 32
    %v651 = vld [vmem:[%s650] sm:$0xff]
    %v652 = vld [vmem:[%s650 + $0x8] sm:$0xff]
    %v653 = vld [vmem:[%s650 + $0x10] sm:$0xff]
    %v654 = vld [vmem:[%s650 + $0x18] sm:$0xff]
    %s655 = scalar_lea.vmem %s6, 32
    %v656 = vld [vmem:[%s655] sm:$0xf]
    %v657 = vld [vmem:[%s655 + $0x4] sm:$0xf]
    %v658 = vld [vmem:[%s655 + $0x8] sm:$0xf]
    %v659 = vld [vmem:[%s655 + $0xc] sm:$0xf]
    %v660 = vld [vmem:[%s655 + $0x10] sm:$0xf]
    %v661 = vld [vmem:[%s655 + $0x14] sm:$0xf]
    %v662 = vld [vmem:[%s655 + $0x18] sm:$0xf]
    %v663 = vld [vmem:[%s655 + $0x1c] sm:$0xf]
    %s664 = sld [smem:[#allocation4 + $0x80]]
    %s665 = sld [smem:[#allocation4 + $0x81]]
    %v670 = vunpack.c.l.b16 %v651
    %v671 = vunpack.c.h.b16 %v651
    %v672 = vunpack.c.l.b16 %v652
    %v673 = vunpack.c.h.b16 %v652
    %v674 = vunpack.c.l.b16 %v653
    %v675 = vunpack.c.h.b16 %v653
    %v676 = vunpack.c.l.b16 %v654
    %v677 = vunpack.c.h.b16 %v654
    %v678 = vpack.c.b16 %v672, %v670
    %v679 = vpack.c.b16 %v673, %v671
    %v680 = vpack.c.b16 %v676, %v674
    %v681 = vpack.c.b16 %v677, %v675
    %v687 = vsel %vm399, %v649, 0
    %689 = vmatprep.subr.bf16.mxu0 %v679
    %690 = vmatpush1.bf16.msra.mxu0 %v678
    %691 = vmatprep.subr.bf16.mxu0 %v681
    %692 = vmatpush1.bf16.msra.mxu0 %v680
    %693 = vmatprep.subr.bf16.mxu0 0
    %694 = vmatpush1.bf16.msra.mxu0 0
    %695 = vmatprep.subr.bf16.mxu0 0
    %696 = vmatpush1.bf16.msra.mxu0 0
    %697 = vmatprep.subr.bf16.mxu0 0
    %698 = vmatpush1.bf16.msra.mxu0 0
    %699 = vmatprep.subr.bf16.mxu0 0
    %700 = vmatpush1.bf16.msra.mxu0 0
    %701 = vmatprep.subr.bf16.mxu0 0
    %702 = vmatpush1.bf16.msra.mxu0 0
    %703 = vmatprep.subr.bf16.mxu0 0
    %704 = vmatpush1.bf16.msra.mxu0 0
    %705 = vmatprep.subr.bf16.mxu0 0
    %706 = vmatpush1.bf16.msra.mxu0 0
    %707 = vmatprep.subr.bf16.mxu0 0
    %708 = vmatpush1.bf16.msra.mxu0 0
    %709 = vmatprep.subr.bf16.mxu0 0
    %710 = vmatpush1.bf16.msra.mxu0 0
    %711 = vmatprep.subr.bf16.mxu0 0
    %712 = vmatpush1.bf16.msra.mxu0 0
    %713 = vmatprep.subr.bf16.mxu0 0
    %714 = vmatpush1.bf16.msra.mxu0 0
    %715 = vmatprep.subr.bf16.mxu0 0
    %716 = vmatpush1.bf16.msra.mxu0 0
    %717 = vmatprep.subr.bf16.mxu0 0
    %718 = vmatpush1.bf16.msra.mxu0 0
    %719 = vmatprep.subr.bf16.mxu0 0
    %720 = vmatpush1.bf16.msra.mxu0 0
    %721 = vmatprep.mubr.bf16.mxu0 0
    %722 = vmatmul.mubr.bf16.gmra.mrb[0].mxu0 %v687
    %v723 = vpop.f32.mrb[0].mxu0
    %v724 = vadd.f32 0.0, %v723
    %v725 = vpop.f32.mrb[0].mxu0
    %v726 = vadd.f32 0.0, %v725
    %v727 = vpop.f32.mrb[0].mxu0
    %v728 = vadd.f32 0.0, %v727
    %v729 = vpop.f32.mrb[0].mxu0
    %v730 = vadd.f32 0.0, %v729
    %731 = vdwg.mxu0
    %v732 = vpack.c.bf16 %v728, %v724
    %735 = vrot.lane.b32.xlu0 %v724, 64
    %v736 = vpop.permute.xlu0 %735
    %737 = vrot.lane.b32.xlu0 %v728, 64
    %v738 = vpop.permute.xlu0 %737
    %741 = vmatprep.subr.bf16.mxu0 0
    %742 = vmatpush1.bf16.msra.mxu0 %v732
    %743 = vmatprep.subr.bf16.mxu0 0
    %744 = vmatpush1.bf16.msra.mxu0 0
    %745 = vmatprep.subr.bf16.mxu0 0
    %746 = vmatpush1.bf16.msra.mxu0 0
    %747 = vmatprep.subr.bf16.mxu0 0
    %748 = vmatpush1.bf16.msra.mxu0 0
    %749 = vmatprep.subr.bf16.mxu0 0
    %750 = vmatpush1.bf16.msra.mxu0 0
    %751 = vmatprep.subr.bf16.mxu0 0
    %752 = vmatpush1.bf16.msra.mxu0 0
    %753 = vmatprep.subr.bf16.mxu0 0
    %754 = vmatpush1.bf16.msra.mxu0 0
    %755 = vmatprep.subr.bf16.mxu0 0
    %756 = vmatpush1.bf16.msra.mxu0 0
    %757 = vmatprep.subr.bf16.mxu0 0
    %758 = vmatpush1.bf16.msra.mxu0 0
    %759 = vmatprep.subr.bf16.mxu0 0
    %760 = vmatpush1.bf16.msra.mxu0 0
    %761 = vmatprep.subr.bf16.mxu0 0
    %762 = vmatpush1.bf16.msra.mxu0 0
    %763 = vmatprep.subr.bf16.mxu0 0
    %764 = vmatpush1.bf16.msra.mxu0 0
    %765 = vmatprep.subr.bf16.mxu0 0
    %766 = vmatpush1.bf16.msra.mxu0 0
    %767 = vmatprep.subr.bf16.mxu0 0
    %768 = vmatpush1.bf16.msra.mxu0 0
    %769 = vmatprep.subr.bf16.mxu0 0
    %770 = vmatpush1.bf16.msra.mxu0 0
    %771 = vmatprep.subr.bf16.mxu0 0
    %772 = vmatpush1.bf16.msra.mxu0 0
    %773 = vmatprep.mubr.bf16.mxu0 0
    %774 = vmatmul.mubr.bf16.gmra.mrb[0].mxu0 %v167
    %v775 = vpop.f32.mrb[0].mxu0
    %v776 = vadd.f32 %v736, %v775
    %v777 = vpop.f32.mrb[0].mxu0
    %v778 = vpop.f32.mrb[0].mxu0
    %v779 = vadd.f32 %v738, %v778
    %v780 = vpop.f32.mrb[0].mxu0
    %781 = vdwg.mxu0
    %v782 = vstv %s664
    %v783 = vadd.f32 %v776, %v782
    %v784 = vadd.f32 %v779, %v782
    %vm785 = vcmp.ge.f32.partialorder %v783, 0.0
    %vm786 = vcmp.ge.f32.partialorder %v784, 0.0
    %v787 = vmul.f32 %v783, 0.2
    %v788 = vmul.f32 %v784, 0.2
    %v789 = vsel %vm785, %v783, %v787
    %v790 = vsel %vm786, %v784, %v788
    %v791 = vpack.c.bf16 %v790, %v789
    %v800 = vunpack.c.l.b16 %v656
    %v801 = vunpack.c.l.b16 %v657
    %v802 = vunpack.c.l.b16 %v658
    %v803 = vunpack.c.l.b16 %v659
    %v804 = vunpack.c.l.b16 %v660
    %v805 = vunpack.c.l.b16 %v661
    %v806 = vunpack.c.l.b16 %v662
    %v807 = vunpack.c.l.b16 %v663
    %v808 = vpack.c.b16 %v801, %v800
    %v809 = vpack.c.b16 %v803, %v802
    %v810 = vpack.c.b16 %v805, %v804
    %v811 = vpack.c.b16 %v807, %v806
    %v817 = vsel %vm244, %v791, 0
    %819 = vmatprep.subr.bf16.mxu0 0
    %820 = vmatpush1.bf16.msra.mxu0 %v808
    %821 = vmatprep.subr.bf16.mxu0 0
    %822 = vmatpush1.bf16.msra.mxu0 %v809
    %823 = vmatprep.subr.bf16.mxu0 0
    %824 = vmatpush1.bf16.msra.mxu0 %v810
    %825 = vmatprep.subr.bf16.mxu0 0
    %826 = vmatpush1.bf16.msra.mxu0 %v811
    %827 = vmatprep.subr.bf16.mxu0 0
    %828 = vmatpush1.bf16.msra.mxu0 0
    %829 = vmatprep.subr.bf16.mxu0 0
    %830 = vmatpush1.bf16.msra.mxu0 0
    %831 = vmatprep.subr.bf16.mxu0 0
    %832 = vmatpush1.bf16.msra.mxu0 0
    %833 = vmatprep.subr.bf16.mxu0 0
    %834 = vmatpush1.bf16.msra.mxu0 0
    %835 = vmatprep.subr.bf16.mxu0 0
    %836 = vmatpush1.bf16.msra.mxu0 0
    %837 = vmatprep.subr.bf16.mxu0 0
    %838 = vmatpush1.bf16.msra.mxu0 0
    %839 = vmatprep.subr.bf16.mxu0 0
    %840 = vmatpush1.bf16.msra.mxu0 0
    %841 = vmatprep.subr.bf16.mxu0 0
    %842 = vmatpush1.bf16.msra.mxu0 0
    %843 = vmatprep.subr.bf16.mxu0 0
    %844 = vmatpush1.bf16.msra.mxu0 0
    %845 = vmatprep.subr.bf16.mxu0 0
    %846 = vmatpush1.bf16.msra.mxu0 0
    %847 = vmatprep.subr.bf16.mxu0 0
    %848 = vmatpush1.bf16.msra.mxu0 0
    %849 = vmatprep.subr.bf16.mxu0 0
    %850 = vmatpush1.bf16.msra.mxu0 0
    %851 = vmatprep.mubr.bf16.mxu0 0
    %852 = vmatmul.mubr.bf16.gmra.mrb[0].mxu0 %v817
    %v853 = vpop.f32.mrb[0].mxu0
    %v854 = vadd.f32 0.0, %v853
    %v855 = vpop.f32.mrb[0].mxu0
    %v856 = vpop.f32.mrb[0].mxu0
    %v857 = vadd.f32 0.0, %v856
    %v858 = vpop.f32.mrb[0].mxu0
    %859 = vdwg.mxu0
    %v860 = vpack.c.bf16 %v857, %v854
    %861 = vmatprep.subr.bf16.mxu0 0
    %862 = vmatpush1.bf16.msra.mxu0 %v860
    %863 = vmatprep.subr.bf16.mxu0 0
    %864 = vmatpush1.bf16.msra.mxu0 0
    %865 = vmatprep.subr.bf16.mxu0 0
    %866 = vmatpush1.bf16.msra.mxu0 0
    %867 = vmatprep.subr.bf16.mxu0 0
    %868 = vmatpush1.bf16.msra.mxu0 0
    %869 = vmatprep.subr.bf16.mxu0 0
    %870 = vmatpush1.bf16.msra.mxu0 0
    %871 = vmatprep.subr.bf16.mxu0 0
    %872 = vmatpush1.bf16.msra.mxu0 0
    %873 = vmatprep.subr.bf16.mxu0 0
    %874 = vmatpush1.bf16.msra.mxu0 0
    %875 = vmatprep.subr.bf16.mxu0 0
    %876 = vmatpush1.bf16.msra.mxu0 0
    %877 = vmatprep.subr.bf16.mxu0 0
    %878 = vmatpush1.bf16.msra.mxu0 0
    %879 = vmatprep.subr.bf16.mxu0 0
    %880 = vmatpush1.bf16.msra.mxu0 0
    %881 = vmatprep.subr.bf16.mxu0 0
    %882 = vmatpush1.bf16.msra.mxu0 0
    %883 = vmatprep.subr.bf16.mxu0 0
    %884 = vmatpush1.bf16.msra.mxu0 0
    %885 = vmatprep.subr.bf16.mxu0 0
    %886 = vmatpush1.bf16.msra.mxu0 0
    %887 = vmatprep.subr.bf16.mxu0 0
    %888 = vmatpush1.bf16.msra.mxu0 0
    %889 = vmatprep.subr.bf16.mxu0 0
    %890 = vmatpush1.bf16.msra.mxu0 0
    %891 = vmatprep.subr.bf16.mxu0 0
    %892 = vmatpush1.bf16.msra.mxu0 0
    %893 = vmatprep.mubr.bf16.mxu0 0
    %894 = vmatmul.mubr.bf16.gmra.mrb[0].mxu0 %v167
    %v895 = vpop.f32.mrb[0].mxu0
    %v896 = vadd.f32 %v726, %v895
    %v897 = vpop.f32.mrb[0].mxu0
    %v898 = vpop.f32.mrb[0].mxu0
    %v899 = vadd.f32 %v730, %v898
    %v900 = vpop.f32.mrb[0].mxu0
    %901 = vdwg.mxu0
    %v902 = vmul.f32 %v726, 0.6
    %v903 = vmul.f32 %v730, 0.6
    %906 = vrot.lane.b32.xlu0 %v902, 64
    %v907 = vpop.permute.xlu0 %906
    %908 = vrot.lane.b32.xlu0 %v903, 64
    %v909 = vpop.permute.xlu0 %908
    %v912 = vadd.f32 %v896, %v907
    %v913 = vadd.f32 %v899, %v909
    %v914 = vstv %s665
    %v915 = vadd.f32 %v912, %v914
    %v916 = vadd.f32 %v913, %v914
    %vm917 = vcmp.ge.f32.partialorder %v915, 0.0
    %vm918 = vcmp.ge.f32.partialorder %v916, 0.0
    %v919 = vmul.f32 %v915, 0.2
    %v920 = vmul.f32 %v916, 0.2
    %v921 = vsel %vm917, %v915, %v919
    %v922 = vsel %vm918, %v916, %v920
    %925 = vrot.lane.b32.xlu0 %v921, 96
    %v926 = vpop.permute.xlu0 %925
    %927 = vrot.lane.b32.xlu0 %v922, 96
    %v928 = vpop.permute.xlu0 %927
    %v931 = vadd.f32 %v921, %v926
    %v932 = vadd.f32 %v922, %v928
    %v933 = vmax.f32 %v931, 0.0
    %v934 = vmax.f32 %v932, 0.0
    %v935 = vpack.c.bf16 %v934, %v933
    %s936 = scalar_lea.vmem %s5, 64
    %v937 = vld [vmem:[%s936] sm:$0xff]
    %v938 = vld [vmem:[%s936 + $0x8] sm:$0xff]
    %v939 = vld [vmem:[%s936 + $0x10] sm:$0xff]
    %v940 = vld [vmem:[%s936 + $0x18] sm:$0xff]
    %s941 = scalar_lea.vmem %s6, 64
    %v942 = vld [vmem:[%s941] sm:$0xf]
    %v943 = vld [vmem:[%s941 + $0x4] sm:$0xf]
    %v944 = vld [vmem:[%s941 + $0x8] sm:$0xf]
    %v945 = vld [vmem:[%s941 + $0xc] sm:$0xf]
    %v946 = vld [vmem:[%s941 + $0x10] sm:$0xf]
    %v947 = vld [vmem:[%s941 + $0x14] sm:$0xf]
    %v948 = vld [vmem:[%s941 + $0x18] sm:$0xf]
    %v949 = vld [vmem:[%s941 + $0x1c] sm:$0xf]
    %s950 = sld [smem:[#allocation4 + $0x100]]
    %s951 = sld [smem:[#allocation4 + $0x101]]
    %v956 = vunpack.c.l.b16 %v937
    %v957 = vunpack.c.h.b16 %v937
    %v958 = vunpack.c.l.b16 %v938
    %v959 = vunpack.c.h.b16 %v938
    %v960 = vunpack.c.l.b16 %v939
    %v961 = vunpack.c.h.b16 %v939
    %v962 = vunpack.c.l.b16 %v940
    %v963 = vunpack.c.h.b16 %v940
    %v964 = vpack.c.b16 %v958, %v956
    %v965 = vpack.c.b16 %v959, %v957
    %v966 = vpack.c.b16 %v962, %v960
    %v967 = vpack.c.b16 %v963, %v961
    %v973 = vsel %vm399, %v935, 0
    %975 = vmatprep.subr.bf16.mxu0 %v965
    %976 = vmatpush1.bf16.msra.mxu0 %v964
    %977 = vmatprep.subr.bf16.mxu0 %v967
    %978 = vmatpush1.bf16.msra.mxu0 %v966
    %979 = vmatprep.subr.bf16.mxu0 0
    %980 = vmatpush1.bf16.msra.mxu0 0
    %981 = vmatprep.subr.bf16.mxu0 0
    %982 = vmatpush1.bf16.msra.mxu0 0
    %983 = vmatprep.subr.bf16.mxu0 0
    %984 = vmatpush1.bf16.msra.mxu0 0
    %985 = vmatprep.subr.bf16.mxu0 0
    %986 = vmatpush1.bf16.msra.mxu0 0
    %987 = vmatprep.subr.bf16.mxu0 0
    %988 = vmatpush1.bf16.msra.mxu0 0
    %989 = vmatprep.subr.bf16.mxu0 0
    %990 = vmatpush1.bf16.msra.mxu0 0
    %991 = vmatprep.subr.bf16.mxu0 0
    %992 = vmatpush1.bf16.msra.mxu0 0
    %993 = vmatprep.subr.bf16.mxu0 0
    %994 = vmatpush1.bf16.msra.mxu0 0
    %995 = vmatprep.subr.bf16.mxu0 0
    %996 = vmatpush1.bf16.msra.mxu0 0
    %997 = vmatprep.subr.bf16.mxu0 0
    %998 = vmatpush1.bf16.msra.mxu0 0
    %999 = vmatprep.subr.bf16.mxu0 0
    %1000 = vmatpush1.bf16.msra.mxu0 0
    %1001 = vmatprep.subr.bf16.mxu0 0
    %1002 = vmatpush1.bf16.msra.mxu0 0
    %1003 = vmatprep.subr.bf16.mxu0 0
    %1004 = vmatpush1.bf16.msra.mxu0 0
    %1005 = vmatprep.subr.bf16.mxu0 0
    %1006 = vmatpush1.bf16.msra.mxu0 0
    %1007 = vmatprep.mubr.bf16.mxu0 0
    %1008 = vmatmul.mubr.bf16.gmra.mrb[0].mxu0 %v973
    %v1009 = vpop.f32.mrb[0].mxu0
    %v1010 = vadd.f32 0.0, %v1009
    %v1011 = vpop.f32.mrb[0].mxu0
    %v1012 = vadd.f32 0.0, %v1011
    %v1013 = vpop.f32.mrb[0].mxu0
    %v1014 = vadd.f32 0.0, %v1013
    %v1015 = vpop.f32.mrb[0].mxu0
    %v1016 = vadd.f32 0.0, %v1015
    %1017 = vdwg.mxu0
    %v1018 = vpack.c.bf16 %v1014, %v1010
    %1021 = vrot.lane.b32.xlu0 %v1010, 64
    %v1022 = vpop.permute.xlu0 %1021
    %1023 = vrot.lane.b32.xlu0 %v1014, 64
    %v1024 = vpop.permute.xlu0 %1023
    %1027 = vmatprep.subr.bf16.mxu0 0
    %1028 = vmatpush1.bf16.msra.mxu0 %v1018
    %1029 = vmatprep.subr.bf16.mxu0 0
    %1030 = vmatpush1.bf16.msra.mxu0 0
    %1031 = vmatprep.subr.bf16.mxu0 0
    %1032 = vmatpush1.bf16.msra.mxu0 0
    %1033 = vmatprep.subr.bf16.mxu0 0
    %1034 = vmatpush1.bf16.msra.mxu0 0
    %1035 = vmatprep.subr.bf16.mxu0 0
    %1036 = vmatpush1.bf16.msra.mxu0 0
    %1037 = vmatprep.subr.bf16.mxu0 0
    %1038 = vmatpush1.bf16.msra.mxu0 0
    %1039 = vmatprep.subr.bf16.mxu0 0
    %1040 = vmatpush1.bf16.msra.mxu0 0
    %1041 = vmatprep.subr.bf16.mxu0 0
    %1042 = vmatpush1.bf16.msra.mxu0 0
    %1043 = vmatprep.subr.bf16.mxu0 0
    %1044 = vmatpush1.bf16.msra.mxu0 0
    %1045 = vmatprep.subr.bf16.mxu0 0
    %1046 = vmatpush1.bf16.msra.mxu0 0
    %1047 = vmatprep.subr.bf16.mxu0 0
    %1048 = vmatpush1.bf16.msra.mxu0 0
    %1049 = vmatprep.subr.bf16.mxu0 0
    %1050 = vmatpush1.bf16.msra.mxu0 0
    %1051 = vmatprep.subr.bf16.mxu0 0
    %1052 = vmatpush1.bf16.msra.mxu0 0
    %1053 = vmatprep.subr.bf16.mxu0 0
    %1054 = vmatpush1.bf16.msra.mxu0 0
    %1055 = vmatprep.subr.bf16.mxu0 0
    %1056 = vmatpush1.bf16.msra.mxu0 0
    %1057 = vmatprep.subr.bf16.mxu0 0
    %1058 = vmatpush1.bf16.msra.mxu0 0
    %1059 = vmatprep.mubr.bf16.mxu0 0
    %1060 = vmatmul.mubr.bf16.gmra.mrb[0].mxu0 %v167
    %v1061 = vpop.f32.mrb[0].mxu0
    %v1062 = vadd.f32 %v1022, %v1061
    %v1063 = vpop.f32.mrb[0].mxu0
    %v1064 = vpop.f32.mrb[0].mxu0
    %v1065 = vadd.f32 %v1024, %v1064
    %v1066 = vpop.f32.mrb[0].mxu0
    %1067 = vdwg.mxu0
    %v1068 = vstv %s950
    %v1069 = vadd.f32 %v1062, %v1068
    %v1070 = vadd.f32 %v1065, %v1068
    %vm1071 = vcmp.ge.f32.partialorder %v1069, 0.0
    %vm1072 = vcmp.ge.f32.partialorder %v1070, 0.0
    %v1073 = vmul.f32 %v1069, 0.2
    %v1074 = vmul.f32 %v1070, 0.2
    %v1075 = vsel %vm1071, %v1069, %v1073
    %v1076 = vsel %vm1072, %v1070, %v1074
    %v1077 = vpack.c.bf16 %v1076, %v1075
    %v1086 = vunpack.c.l.b16 %v942
    %v1087 = vunpack.c.l.b16 %v943
    %v1088 = vunpack.c.l.b16 %v944
    %v1089 = vunpack.c.l.b16 %v945
    %v1090 = vunpack.c.l.b16 %v946
    %v1091 = vunpack.c.l.b16 %v947
    %v1092 = vunpack.c.l.b16 %v948
    %v1093 = vunpack.c.l.b16 %v949
    %v1094 = vpack.c.b16 %v1087, %v1086
    %v1095 = vpack.c.b16 %v1089, %v1088
    %v1096 = vpack.c.b16 %v1091, %v1090
    %v1097 = vpack.c.b16 %v1093, %v1092
    %v1103 = vsel %vm244, %v1077, 0
    %1105 = vmatprep.subr.bf16.mxu0 0
    %1106 = vmatpush1.bf16.msra.mxu0 %v1094
    %1107 = vmatprep.subr.bf16.mxu0 0
    %1108 = vmatpush1.bf16.msra.mxu0 %v1095
    %1109 = vmatprep.subr.bf16.mxu0 0
    %1110 = vmatpush1.bf16.msra.mxu0 %v1096
    %1111 = vmatprep.subr.bf16.mxu0 0
    %1112 = vmatpush1.bf16.msra.mxu0 %v1097
    %1113 = vmatprep.subr.bf16.mxu0 0
    %1114 = vmatpush1.bf16.msra.mxu0 0
    %1115 = vmatprep.subr.bf16.mxu0 0
    %1116 = vmatpush1.bf16.msra.mxu0 0
    %1117 = vmatprep.subr.bf16.mxu0 0
    %1118 = vmatpush1.bf16.msra.mxu0 0
    %1119 = vmatprep.subr.bf16.mxu0 0
    %1120 = vmatpush1.bf16.msra.mxu0 0
    %1121 = vmatprep.subr.bf16.mxu0 0
    %1122 = vmatpush1.bf16.msra.mxu0 0
    %1123 = vmatprep.subr.bf16.mxu0 0
    %1124 = vmatpush1.bf16.msra.mxu0 0
    %1125 = vmatprep.subr.bf16.mxu0 0
    %1126 = vmatpush1.bf16.msra.mxu0 0
    %1127 = vmatprep.subr.bf16.mxu0 0
    %1128 = vmatpush1.bf16.msra.mxu0 0
    %1129 = vmatprep.subr.bf16.mxu0 0
    %1130 = vmatpush1.bf16.msra.mxu0 0
    %1131 = vmatprep.subr.bf16.mxu0 0
    %1132 = vmatpush1.bf16.msra.mxu0 0
    %1133 = vmatprep.subr.bf16.mxu0 0
    %1134 = vmatpush1.bf16.msra.mxu0 0
    %1135 = vmatprep.subr.bf16.mxu0 0
    %1136 = vmatpush1.bf16.msra.mxu0 0
    %1137 = vmatprep.mubr.bf16.mxu0 0
    %1138 = vmatmul.mubr.bf16.gmra.mrb[0].mxu0 %v1103
    %v1139 = vpop.f32.mrb[0].mxu0
    %v1140 = vadd.f32 0.0, %v1139
    %v1141 = vpop.f32.mrb[0].mxu0
    %v1142 = vpop.f32.mrb[0].mxu0
    %v1143 = vadd.f32 0.0, %v1142
    %v1144 = vpop.f32.mrb[0].mxu0
    %1145 = vdwg.mxu0
    %v1146 = vpack.c.bf16 %v1143, %v1140
    %1147 = vmatprep.subr.bf16.mxu0 0
    %1148 = vmatpush1.bf16.msra.mxu0 %v1146
    %1149 = vmatprep.subr.bf16.mxu0 0
    %1150 = vmatpush1.bf16.msra.mxu0 0
    %1151 = vmatprep.subr.bf16.mxu0 0
    %1152 = vmatpush1.bf16.msra.mxu0 0
    %1153 = vmatprep.subr.bf16.mxu0 0
    %1154 = vmatpush1.bf16.msra.mxu0 0
    %1155 = vmatprep.subr.bf16.mxu0 0
    %1156 = vmatpush1.bf16.msra.mxu0 0
    %1157 = vmatprep.subr.bf16.mxu0 0
    %1158 = vmatpush1.bf16.msra.mxu0 0
    %1159 = vmatprep.subr.bf16.mxu0 0
    %1160 = vmatpush1.bf16.msra.mxu0 0
    %1161 = vmatprep.subr.bf16.mxu0 0
    %1162 = vmatpush1.bf16.msra.mxu0 0
    %1163 = vmatprep.subr.bf16.mxu0 0
    %1164 = vmatpush1.bf16.msra.mxu0 0
    %1165 = vmatprep.subr.bf16.mxu0 0
    %1166 = vmatpush1.bf16.msra.mxu0 0
    %1167 = vmatprep.subr.bf16.mxu0 0
    %1168 = vmatpush1.bf16.msra.mxu0 0
    %1169 = vmatprep.subr.bf16.mxu0 0
    %1170 = vmatpush1.bf16.msra.mxu0 0
    %1171 = vmatprep.subr.bf16.mxu0 0
    %1172 = vmatpush1.bf16.msra.mxu0 0
    %1173 = vmatprep.subr.bf16.mxu0 0
    %1174 = vmatpush1.bf16.msra.mxu0 0
    %1175 = vmatprep.subr.bf16.mxu0 0
    %1176 = vmatpush1.bf16.msra.mxu0 0
    %1177 = vmatprep.subr.bf16.mxu0 0
    %1178 = vmatpush1.bf16.msra.mxu0 0
    %1179 = vmatprep.mubr.bf16.mxu0 0
    %1180 = vmatmul.mubr.bf16.gmra.mrb[0].mxu0 %v167
    %v1181 = vpop.f32.mrb[0].mxu0
    %v1182 = vadd.f32 %v1012, %v1181
    %v1183 = vpop.f32.mrb[0].mxu0
    %v1184 = vpop.f32.mrb[0].mxu0
    %v1185 = vadd.f32 %v1016, %v1184
    %v1186 = vpop.f32.mrb[0].mxu0
    %1187 = vdwg.mxu0
    %v1188 = vmul.f32 %v1012, 0.6
    %v1189 = vmul.f32 %v1016, 0.6
    %1192 = vrot.lane.b32.xlu0 %v1188, 64
    %v1193 = vpop.permute.xlu0 %1192
    %1194 = vrot.lane.b32.xlu0 %v1189, 64
    %v1195 = vpop.permute.xlu0 %1194
    %v1198 = vadd.f32 %v1182, %v1193
    %v1199 = vadd.f32 %v1185, %v1195
    %v1200 = vstv %s951
    %v1201 = vadd.f32 %v1198, %v1200
    %v1202 = vadd.f32 %v1199, %v1200
    %vm1203 = vcmp.ge.f32.partialorder %v1201, 0.0
    %vm1204 = vcmp.ge.f32.partialorder %v1202, 0.0
    %v1205 = vmul.f32 %v1201, 0.2
    %v1206 = vmul.f32 %v1202, 0.2
    %v1207 = vsel %vm1203, %v1201, %v1205
    %v1208 = vsel %vm1204, %v1202, %v1206
    %1211 = vrot.lane.b32.xlu0 %v1207, 96
    %v1212 = vpop.permute.xlu0 %1211
    %1213 = vrot.lane.b32.xlu0 %v1208, 96
    %v1214 = vpop.permute.xlu0 %1213
    %v1217 = vadd.f32 %v1207, %v1212
    %v1218 = vadd.f32 %v1208, %v1214
    %v1219 = vmax.f32 %v1217, 0.0
    %v1220 = vmax.f32 %v1218, 0.0
    %v1221 = vpack.c.bf16 %v1220, %v1219
    %s1222 = scalar_lea.vmem %s5, 96
    %v1223 = vld [vmem:[%s1222] sm:$0xff]
    %v1224 = vld [vmem:[%s1222 + $0x8] sm:$0xff]
    %v1225 = vld [vmem:[%s1222 + $0x10] sm:$0xff]
    %v1226 = vld [vmem:[%s1222 + $0x18] sm:$0xff]
    %s1227 = scalar_lea.vmem %s6, 96
    %v1228 = vld [vmem:[%s1227] sm:$0xf]
    %v1229 = vld [vmem:[%s1227 + $0x4] sm:$0xf]
    %v1230 = vld [vmem:[%s1227 + $0x8] sm:$0xf]
    %v1231 = vld [vmem:[%s1227 + $0xc] sm:$0xf]
    %v1232 = vld [vmem:[%s1227 + $0x10] sm:$0xf]
    %v1233 = vld [vmem:[%s1227 + $0x14] sm:$0xf]
    %v1234 = vld [vmem:[%s1227 + $0x18] sm:$0xf]
    %v1235 = vld [vmem:[%s1227 + $0x1c] sm:$0xf]
    %s1236 = sld [smem:[#allocation4 + $0x180]]
    %s1237 = sld [smem:[#allocation4 + $0x181]]
    %v1242 = vunpack.c.l.b16 %v1223
    %v1243 = vunpack.c.h.b16 %v1223
    %v1244 = vunpack.c.l.b16 %v1224
    %v1245 = vunpack.c.h.b16 %v1224
    %v1246 = vunpack.c.l.b16 %v1225
    %v1247 = vunpack.c.h.b16 %v1225
    %v1248 = vunpack.c.l.b16 %v1226
    %v1249 = vunpack.c.h.b16 %v1226
    %v1250 = vpack.c.b16 %v1244, %v1242
    %v1251 = vpack.c.b16 %v1245, %v1243
    %v1252 = vpack.c.b16 %v1248, %v1246
    %v1253 = vpack.c.b16 %v1249, %v1247
    %v1259 = vsel %vm399, %v1221, 0
    %1261 = vmatprep.subr.bf16.mxu0 %v1251
    %1262 = vmatpush1.bf16.msra.mxu0 %v1250
    %1263 = vmatprep.subr.bf16.mxu0 %v1253
    %1264 = vmatpush1.bf16.msra.mxu0 %v1252
    %1265 = vmatprep.subr.bf16.mxu0 0
    %1266 = vmatpush1.bf16.msra.mxu0 0
    %1267 = vmatprep.subr.bf16.mxu0 0
    %1268 = vmatpush1.bf16.msra.mxu0 0
    %1269 = vmatprep.subr.bf16.mxu0 0
    %1270 = vmatpush1.bf16.msra.mxu0 0
    %1271 = vmatprep.subr.bf16.mxu0 0
    %1272 = vmatpush1.bf16.msra.mxu0 0
    %1273 = vmatprep.subr.bf16.mxu0 0
    %1274 = vmatpush1.bf16.msra.mxu0 0
    %1275 = vmatprep.subr.bf16.mxu0 0
    %1276 = vmatpush1.bf16.msra.mxu0 0
    %1277 = vmatprep.subr.bf16.mxu0 0
    %1278 = vmatpush1.bf16.msra.mxu0 0
    %1279 = vmatprep.subr.bf16.mxu0 0
    %1280 = vmatpush1.bf16.msra.mxu0 0
    %1281 = vmatprep.subr.bf16.mxu0 0
    %1282 = vmatpush1.bf16.msra.mxu0 0
    %1283 = vmatprep.subr.bf16.mxu0 0
    %1284 = vmatpush1.bf16.msra.mxu0 0
    %1285 = vmatprep.subr.bf16.mxu0 0
    %1286 = vmatpush1.bf16.msra.mxu0 0
    %1287 = vmatprep.subr.bf16.mxu0 0
    %1288 = vmatpush1.bf16.msra.mxu0 0
    %1289 = vmatprep.subr.bf16.mxu0 0
    %1290 = vmatpush1.bf16.msra.mxu0 0
    %1291 = vmatprep.subr.bf16.mxu0 0
    %1292 = vmatpush1.bf16.msra.mxu0 0
    %1293 = vmatprep.mubr.bf16.mxu0 0
    %1294 = vmatmul.mubr.bf16.gmra.mrb[0].mxu0 %v1259
    %v1295 = vpop.f32.mrb[0].mxu0
    %v1296 = vadd.f32 0.0, %v1295
    %v1297 = vpop.f32.mrb[0].mxu0
    %v1298 = vadd.f32 0.0, %v1297
    %v1299 = vpop.f32.mrb[0].mxu0
    %v1300 = vadd.f32 0.0, %v1299
    %v1301 = vpop.f32.mrb[0].mxu0
    %v1302 = vadd.f32 0.0, %v1301
    %1303 = vdwg.mxu0
    %v1304 = vpack.c.bf16 %v1300, %v1296
    %1307 = vrot.lane.b32.xlu0 %v1296, 64
    %v1308 = vpop.permute.xlu0 %1307
    %1309 = vrot.lane.b32.xlu0 %v1300, 64
    %v1310 = vpop.permute.xlu0 %1309
    %1313 = vmatprep.subr.bf16.mxu0 0
    %1314 = vmatpush1.bf16.msra.mxu0 %v1304
    %1315 = vmatprep.subr.bf16.mxu0 0
    %1316 = vmatpush1.bf16.msra.mxu0 0
    %1317 = vmatprep.subr.bf16.mxu0 0
    %1318 = vmatpush1.bf16.msra.mxu0 0
    %1319 = vmatprep.subr.bf16.mxu0 0
    %1320 = vmatpush1.bf16.msra.mxu0 0
    %1321 = vmatprep.subr.bf16.mxu0 0
    %1322 = vmatpush1.bf16.msra.mxu0 0
    %1323 = vmatprep.subr.bf16.mxu0 0
    %1324 = vmatpush1.bf16.msra.mxu0 0
    %1325 = vmatprep.subr.bf16.mxu0 0
    %1326 = vmatpush1.bf16.msra.mxu0 0
    %1327 = vmatprep.subr.bf16.mxu0 0
    %1328 = vmatpush1.bf16.msra.mxu0 0
    %1329 = vmatprep.subr.bf16.mxu0 0
    %1330 = vmatpush1.bf16.msra.mxu0 0
    %1331 = vmatprep.subr.bf16.mxu0 0
    %1332 = vmatpush1.bf16.msra.mxu0 0
    %1333 = vmatprep.subr.bf16.mxu0 0
    %1334 = vmatpush1.bf16.msra.mxu0 0
    %1335 = vmatprep.subr.bf16.mxu0 0
    %1336 = vmatpush1.bf16.msra.mxu0 0
    %1337 = vmatprep.subr.bf16.mxu0 0
    %1338 = vmatpush1.bf16.msra.mxu0 0
    %1339 = vmatprep.subr.bf16.mxu0 0
    %1340 = vmatpush1.bf16.msra.mxu0 0
    %1341 = vmatprep.subr.bf16.mxu0 0
    %1342 = vmatpush1.bf16.msra.mxu0 0
    %1343 = vmatprep.subr.bf16.mxu0 0
    %1344 = vmatpush1.bf16.msra.mxu0 0
    %1345 = vmatprep.mubr.bf16.mxu0 0
    %1346 = vmatmul.mubr.bf16.gmra.mrb[0].mxu0 %v167
    %v1347 = vpop.f32.mrb[0].mxu0
    %v1348 = vadd.f32 %v1308, %v1347
    %v1349 = vpop.f32.mrb[0].mxu0
    %v1350 = vpop.f32.mrb[0].mxu0
    %v1351 = vadd.f32 %v1310, %v1350
    %v1352 = vpop.f32.mrb[0].mxu0
    %1353 = vdwg.mxu0
    %v1354 = vstv %s1236
    %v1355 = vadd.f32 %v1348, %v1354
    %v1356 = vadd.f32 %v1351, %v1354
    %vm1357 = vcmp.ge.f32.partialorder %v1355, 0.0
    %vm1358 = vcmp.ge.f32.partialorder %v1356, 0.0
    %v1359 = vmul.f32 %v1355, 0.2
    %v1360 = vmul.f32 %v1356, 0.2
    %v1361 = vsel %vm1357, %v1355, %v1359
    %v1362 = vsel %vm1358, %v1356, %v1360
    %v1363 = vpack.c.bf16 %v1362, %v1361
    %v1372 = vunpack.c.l.b16 %v1228
    %v1373 = vunpack.c.l.b16 %v1229
    %v1374 = vunpack.c.l.b16 %v1230
    %v1375 = vunpack.c.l.b16 %v1231
    %v1376 = vunpack.c.l.b16 %v1232
    %v1377 = vunpack.c.l.b16 %v1233
    %v1378 = vunpack.c.l.b16 %v1234
    %v1379 = vunpack.c.l.b16 %v1235
    %v1380 = vpack.c.b16 %v1373, %v1372
    %v1381 = vpack.c.b16 %v1375, %v1374
    %v1382 = vpack.c.b16 %v1377, %v1376
    %v1383 = vpack.c.b16 %v1379, %v1378
    %v1389 = vsel %vm244, %v1363, 0
    %1391 = vmatprep.subr.bf16.mxu0 0
    %1392 = vmatpush1.bf16.msra.mxu0 %v1380
    %1393 = vmatprep.subr.bf16.mxu0 0
    %1394 = vmatpush1.bf16.msra.mxu0 %v1381
    %1395 = vmatprep.subr.bf16.mxu0 0
    %1396 = vmatpush1.bf16.msra.mxu0 %v1382
    %1397 = vmatprep.subr.bf16.mxu0 0
    %1398 = vmatpush1.bf16.msra.mxu0 %v1383
    %1399 = vmatprep.subr.bf16.mxu0 0
    %1400 = vmatpush1.bf16.msra.mxu0 0
    %1401 = vmatprep.subr.bf16.mxu0 0
    %1402 = vmatpush1.bf16.msra.mxu0 0
    %1403 = vmatprep.subr.bf16.mxu0 0
    %1404 = vmatpush1.bf16.msra.mxu0 0
    %1405 = vmatprep.subr.bf16.mxu0 0
    %1406 = vmatpush1.bf16.msra.mxu0 0
    %1407 = vmatprep.subr.bf16.mxu0 0
    %1408 = vmatpush1.bf16.msra.mxu0 0
    %1409 = vmatprep.subr.bf16.mxu0 0
    %1410 = vmatpush1.bf16.msra.mxu0 0
    %1411 = vmatprep.subr.bf16.mxu0 0
    %1412 = vmatpush1.bf16.msra.mxu0 0
    %1413 = vmatprep.subr.bf16.mxu0 0
    %1414 = vmatpush1.bf16.msra.mxu0 0
    %1415 = vmatprep.subr.bf16.mxu0 0
    %1416 = vmatpush1.bf16.msra.mxu0 0
    %1417 = vmatprep.subr.bf16.mxu0 0
    %1418 = vmatpush1.bf16.msra.mxu0 0
    %1419 = vmatprep.subr.bf16.mxu0 0
    %1420 = vmatpush1.bf16.msra.mxu0 0
    %1421 = vmatprep.subr.bf16.mxu0 0
    %1422 = vmatpush1.bf16.msra.mxu0 0
    %1423 = vmatprep.mubr.bf16.mxu0 0
    %1424 = vmatmul.mubr.bf16.gmra.mrb[0].mxu0 %v1389
    %v1425 = vpop.f32.mrb[0].mxu0
    %v1426 = vadd.f32 0.0, %v1425
    %v1427 = vpop.f32.mrb[0].mxu0
    %v1428 = vpop.f32.mrb[0].mxu0
    %v1429 = vadd.f32 0.0, %v1428
    %v1430 = vpop.f32.mrb[0].mxu0
    %1431 = vdwg.mxu0
    %v1432 = vpack.c.bf16 %v1429, %v1426
    %1433 = vmatprep.subr.bf16.mxu0 0
    %1434 = vmatpush1.bf16.msra.mxu0 %v1432
    %1435 = vmatprep.subr.bf16.mxu0 0
    %1436 = vmatpush1.bf16.msra.mxu0 0
    %1437 = vmatprep.subr.bf16.mxu0 0
    %1438 = vmatpush1.bf16.msra.mxu0 0
    %1439 = vmatprep.subr.bf16.mxu0 0
    %1440 = vmatpush1.bf16.msra.mxu0 0
    %1441 = vmatprep.subr.bf16.mxu0 0
    %1442 = vmatpush1.bf16.msra.mxu0 0
    %1443 = vmatprep.subr.bf16.mxu0 0
    %1444 = vmatpush1.bf16.msra.mxu0 0
    %1445 = vmatprep.subr.bf16.mxu0 0
    %1446 = vmatpush1.bf16.msra.mxu0 0
    %1447 = vmatprep.subr.bf16.mxu0 0
    %1448 = vmatpush1.bf16.msra.mxu0 0
    %1449 = vmatprep.subr.bf16.mxu0 0
    %1450 = vmatpush1.bf16.msra.mxu0 0
    %1451 = vmatprep.subr.bf16.mxu0 0
    %1452 = vmatpush1.bf16.msra.mxu0 0
    %1453 = vmatprep.subr.bf16.mxu0 0
    %1454 = vmatpush1.bf16.msra.mxu0 0
    %1455 = vmatprep.subr.bf16.mxu0 0
    %1456 = vmatpush1.bf16.msra.mxu0 0
    %1457 = vmatprep.subr.bf16.mxu0 0
    %1458 = vmatpush1.bf16.msra.mxu0 0
    %1459 = vmatprep.subr.bf16.mxu0 0
    %1460 = vmatpush1.bf16.msra.mxu0 0
    %1461 = vmatprep.subr.bf16.mxu0 0
    %1462 = vmatpush1.bf16.msra.mxu0 0
    %1463 = vmatprep.subr.bf16.mxu0 0
    %1464 = vmatpush1.bf16.msra.mxu0 0
    %1465 = vmatprep.mubr.bf16.mxu0 0
    %1466 = vmatmul.mubr.bf16.gmra.mrb[0].mxu0 %v167
    %v1467 = vpop.f32.mrb[0].mxu0
    %v1468 = vadd.f32 %v1298, %v1467
    %v1469 = vpop.f32.mrb[0].mxu0
    %v1470 = vpop.f32.mrb[0].mxu0
    %v1471 = vadd.f32 %v1302, %v1470
    %v1472 = vpop.f32.mrb[0].mxu0
    %1473 = vdwg.mxu0
    %v1474 = vmul.f32 %v1298, 0.6
    %v1475 = vmul.f32 %v1302, 0.6
    %1478 = vrot.lane.b32.xlu0 %v1474, 64
    %v1479 = vpop.permute.xlu0 %1478
    %1480 = vrot.lane.b32.xlu0 %v1475, 64
    %v1481 = vpop.permute.xlu0 %1480
    %v1484 = vadd.f32 %v1468, %v1479
    %v1485 = vadd.f32 %v1471, %v1481
    %v1486 = vstv %s1237
    %v1487 = vadd.f32 %v1484, %v1486
    %v1488 = vadd.f32 %v1485, %v1486
    %vm1489 = vcmp.ge.f32.partialorder %v1487, 0.0
    %vm1490 = vcmp.ge.f32.partialorder %v1488, 0.0
    %v1491 = vmul.f32 %v1487, 0.2
    %v1492 = vmul.f32 %v1488, 0.2
    %v1493 = vsel %vm1489, %v1487, %v1491
    %v1494 = vsel %vm1490, %v1488, %v1492
    %1497 = vrot.lane.b32.xlu0 %v1493, 96
    %v1498 = vpop.permute.xlu0 %1497
    %1499 = vrot.lane.b32.xlu0 %v1494, 96
    %v1500 = vpop.permute.xlu0 %1499
    %v1503 = vadd.f32 %v1493, %v1498
    %v1504 = vadd.f32 %v1494, %v1500
    %v1505 = vmax.f32 %v1503, 0.0
    %v1506 = vmax.f32 %v1504, 0.0
    %v1507 = vpack.c.bf16 %v1506, %v1505
    %v1508 = vld [vmem:[%s8] sm:$0xf]
    %v1509 = vld [vmem:[%s8 + $0x4] sm:$0xf]
    %v1510 = vld [vmem:[%s8 + $0x8] sm:$0xf]
    %v1511 = vld [vmem:[%s8 + $0xc] sm:$0xf]
    %v1516 = vunpack.c.l.b16 %v1508
    %v1517 = vunpack.c.l.b16 %v1509
    %v1518 = vunpack.c.l.b16 %v1510
    %v1519 = vunpack.c.l.b16 %v1511
    %v1520 = vpack.c.b16 %v1517, %v1516
    %v1521 = vpack.c.b16 %v1519, %v1518
    %v1525 = vsel %vm399, %v1507, 0
    %1527 = vmatprep.subr.bf16.mxu0 0
    %1528 = vmatpush1.bf16.msra.mxu0 %v1520
    %1529 = vmatprep.subr.bf16.mxu0 0
    %1530 = vmatpush1.bf16.msra.mxu0 %v1521
    %1531 = vmatprep.subr.bf16.mxu0 0
    %1532 = vmatpush1.bf16.msra.mxu0 0
    %1533 = vmatprep.subr.bf16.mxu0 0
    %1534 = vmatpush1.bf16.msra.mxu0 0
    %1535 = vmatprep.subr.bf16.mxu0 0
    %1536 = vmatpush1.bf16.msra.mxu0 0
    %1537 = vmatprep.subr.bf16.mxu0 0
    %1538 = vmatpush1.bf16.msra.mxu0 0
    %1539 = vmatprep.subr.bf16.mxu0 0
    %1540 = vmatpush1.bf16.msra.mxu0 0
    %1541 = vmatprep.subr.bf16.mxu0 0
    %1542 = vmatpush1.bf16.msra.mxu0 0
    %1543 = vmatprep.subr.bf16.mxu0 0
    %1544 = vmatpush1.bf16.msra.mxu0 0
    %1545 = vmatprep.subr.bf16.mxu0 0
    %1546 = vmatpush1.bf16.msra.mxu0 0
    %1547 = vmatprep.subr.bf16.mxu0 0
    %1548 = vmatpush1.bf16.msra.mxu0 0
    %1549 = vmatprep.subr.bf16.mxu0 0
    %1550 = vmatpush1.bf16.msra.mxu0 0
    %1551 = vmatprep.subr.bf16.mxu0 0
    %1552 = vmatpush1.bf16.msra.mxu0 0
    %1553 = vmatprep.subr.bf16.mxu0 0
    %1554 = vmatpush1.bf16.msra.mxu0 0
    %1555 = vmatprep.subr.bf16.mxu0 0
    %1556 = vmatpush1.bf16.msra.mxu0 0
    %1557 = vmatprep.subr.bf16.mxu0 0
    %1558 = vmatpush1.bf16.msra.mxu0 0
    %1559 = vmatprep.mubr.bf16.mxu0 0
    %1560 = vmatmul.mubr.bf16.gmra.mrb[0].mxu0 %v1525
    %v1561 = vpop.f32.mrb[0].mxu0
    %v1562 = vadd.f32 0.0, %v1561
    %v1563 = vpop.f32.mrb[0].mxu0
    %v1564 = vpop.f32.mrb[0].mxu0
    %v1565 = vadd.f32 0.0, %v1564
    %v1566 = vpop.f32.mrb[0].mxu0
    %1567 = vdwg.mxu0
    %v1568 = vpack.c.bf16 %v1565, %v1562
    %1571 = vrot.lane.b32.xlu0 %v1562, 120
    %v1572 = vpop.permute.xlu0 %1571
    %1573 = vrot.lane.b32.xlu0 %v1565, 120
    %v1574 = vpop.permute.xlu0 %1573
    %1577 = vmatprep.subr.bf16.mxu0 0
    %1578 = vmatpush1.bf16.msra.mxu0 %v1568
    %1579 = vmatprep.subr.bf16.mxu0 0
    %1580 = vmatpush1.bf16.msra.mxu0 0
    %1581 = vmatprep.subr.bf16.mxu0 0
    %1582 = vmatpush1.bf16.msra.mxu0 0
    %1583 = vmatprep.subr.bf16.mxu0 0
    %1584 = vmatpush1.bf16.msra.mxu0 0
    %1585 = vmatprep.subr.bf16.mxu0 0
    %1586 = vmatpush1.bf16.msra.mxu0 0
    %1587 = vmatprep.subr.bf16.mxu0 0
    %1588 = vmatpush1.bf16.msra.mxu0 0
    %1589 = vmatprep.subr.bf16.mxu0 0
    %1590 = vmatpush1.bf16.msra.mxu0 0
    %1591 = vmatprep.subr.bf16.mxu0 0
    %1592 = vmatpush1.bf16.msra.mxu0 0
    %1593 = vmatprep.subr.bf16.mxu0 0
    %1594 = vmatpush1.bf16.msra.mxu0 0
    %1595 = vmatprep.subr.bf16.mxu0 0
    %1596 = vmatpush1.bf16.msra.mxu0 0
    %1597 = vmatprep.subr.bf16.mxu0 0
    %1598 = vmatpush1.bf16.msra.mxu0 0
    %1599 = vmatprep.subr.bf16.mxu0 0
    %1600 = vmatpush1.bf16.msra.mxu0 0
    %1601 = vmatprep.subr.bf16.mxu0 0
    %1602 = vmatpush1.bf16.msra.mxu0 0
    %1603 = vmatprep.subr.bf16.mxu0 0
    %1604 = vmatpush1.bf16.msra.mxu0 0
    %1605 = vmatprep.subr.bf16.mxu0 0
    %1606 = vmatpush1.bf16.msra.mxu0 0
    %1607 = vmatprep.subr.bf16.mxu0 0
    %1608 = vmatpush1.bf16.msra.mxu0 0
    %1609 = vmatprep.mubr.bf16.mxu0 0
    %1610 = vmatmul.mubr.bf16.gmra.mrb[0].mxu0 %v167
    %v1611 = vpop.f32.mrb[0].mxu0
    %v1612 = vadd.f32 %v1572, %v1611
    %v1613 = vpop.f32.mrb[0].mxu0
    %v1614 = vpop.f32.mrb[0].mxu0
    %v1615 = vadd.f32 %v1574, %v1614
    %v1616 = vpop.f32.mrb[0].mxu0
    %1617 = vdwg.mxu0
    %s1618 = sld [smem:[#allocation6]]
    %v1619 = vstv %s1618
    %v1620 = vadd.f32 %v1612, %v1619
    %v1621 = vadd.f32 %v1615, %v1619
    %vm1622 = vcmp.ge.f32.partialorder %v1620, 0.0
    %vm1623 = vcmp.ge.f32.partialorder %v1621, 0.0
    %v1624 = vmul.f32 %v1620, 0.2
    %v1625 = vmul.f32 %v1621, 0.2
    %v1626 = vsel %vm1622, %v1620, %v1624
    %v1627 = vsel %vm1623, %v1621, %v1625
    %v1628 = vsel %vm97, %v1626, -inf
    %1629 = vmax.xlane.f32.xlu0 %v1628
    %v1630 = vpop.xlane.xlu0 %1629
    %v1631 = vsel %vm97, %v1627, -inf
    %1632 = vmax.xlane.f32.xlu0 %v1631
    %v1633 = vpop.xlane.xlu0 %1632
    %v1634 = vsub.f32 %v1626, %v1630
    %v1635 = vsub.f32 %v1627, %v1633
    %v1636 = vmul.f32 %v1634, 1.442695
    %v1637 = vpow.pop %v1636
    %v1638 = vmul.f32 %v1635, 1.442695
    %v1639 = vpow.pop %v1638
    %v1640 = vsel %vm97, %v1637, 0.0
    %1641 = vadd.xlane.f32.xlu0 %v1640
    %v1642 = vpop.xlane.xlu0 %1641
    %v1643 = vsel %vm97, %v1639, 0.0
    %1644 = vadd.xlane.f32.xlu0 %v1643
    %v1645 = vpop.xlane.xlu0 %1644
    %v1646 = vlog2.pop %v1642
    %v1647 = vmul.f32 %v1646, 0.6931472
    %v1648 = vlog2.pop %v1645
    %v1649 = vmul.f32 %v1648, 0.6931472
    %v1650 = vsub.f32 %v1634, %v1647
    %v1651 = vsub.f32 %v1635, %v1649
    %1652 = vst.msk [vmem:[%s10] sm:$0xff] %vm97, %v1650
    %1653 = vst.msk [vmem:[%s10 + $0x8] sm:$0xff] %vm97, %v1651
    // Predicated region
    $region54: #{grn_forward.1} parent=1 // pred_check
      _
    $region55: #{grn_forward.1} parent=1 // pred_check_branch
      %1655 = sbr.rel (0) target = $region57
    $region56: #{grn_forward.1} parent=1 // pred_region
      _
    $region57: #{grn_forward.1} parent=1 // pred_fallthru
      _
    // Predicated region
    $region58: #{grn_forward.1} parent=1 // pred_check
      _
    $region59: #{grn_forward.1} parent=1 // pred_check_branch
      %1657 = sbr.rel (0) target = $region61
    $region60: #{grn_forward.1} parent=1 // pred_region
      _
    $region61: #{grn_forward.1} parent=1 // pred_fallthru
      _
    %1658 = vsyncpa [#allocation3], 1
    %1659 = vsyncpa [#allocation5], 1

</llo_original>
